<compile_context>
chip_gen: v6e
topology: v6e:2x2x1
jax: 0.10.0
libtpu: 0.0.40
codegen_flags: <defaults>
</compile_context>

<pallas_src>
import math

import numpy as np
import jax
import jax.numpy as jnp
from jax.experimental import pallas as pl
from jax.experimental.pallas import tpu as pltpu


# ---------------------------------------------------------------------------
# Exact weights of the PyTorch module (factor 2 -> kernel 4, taps .25/.75).
# ---------------------------------------------------------------------------
def _bilinear_1d_taps():
    width = 4
    f = float(math.ceil(width / 2.0))
    c = float(width - 1) / (2.0 * f)
    return np.array([1.0 - abs(t / f - c) for t in range(width)],
                    dtype=np.float32)          # [0.25, 0.75, 0.75, 0.25]


def _upsample_matrix(L):
    """conv_transpose1d(stride=2, kernel=4, padding=1) as an exact (2L, L) matrix."""
    taps = _bilinear_1d_taps()
    stride, pad, K = 2, 1, 4
    out_len = (L - 1) * stride - 2 * pad + K   # == 2L
    A = np.zeros((out_len, L), dtype=np.float32)
    for o in range(out_len):
        for k in range(K):
            num = o + pad - k
            if num % stride == 0:
                i = num // stride
                if 0 <= i < L:
                    A[o, i] += taps[k]
    return A


# ---------------------------------------------------------------------------
# Helpers: tiling / VMEM budgeting
# ---------------------------------------------------------------------------
def _cdiv(a, b):
    return -(-a // b)


def _round_up(v, m):
    return _cdiv(v, m) * m


def _vmem_budget_and_limit():
    """Generation-aware VMEM budget for block sizing + explicit scoped limit."""
    try:
        cap = int(pltpu.get_tpu_info().vmem_capacity_bytes)
    except Exception:
        cap = 64 << 20                                 # conservative (v7x physical)
    # v7x: 64 MiB physical per TC -> keep per-step footprint ~24 MiB.
    # v5e/v6e: 128 MiB physical -> allow ~30 MiB and raise the scoped limit.
    budget = (24 << 20) if cap <= (64 << 20) else (30 << 20)
    limit = min(cap - (8 << 20), budget + (16 << 20))  # headroom for temporaries
    return budget, limit


def _resident_spec(shape, index_map):
    """Constant-block weight operand: resident in VMEM, single-buffered when
    the installed Pallas supports per-operand pipeline_mode."""
    try:
        return pl.BlockSpec(shape, index_map, pipeline_mode=pl.Buffered(1))
    except (TypeError, AttributeError):
        return pl.BlockSpec(shape, index_map)


def _pick_batch_tile(B, bytes_per_row, resident_bytes, budget, align, min_rows):
    """Rows (planes) per grid step: fill the VMEM budget, prefer an EVEN number
    of grid steps so v7x's two TensorCores stay balanced on the parallel axis."""
    avail = max(budget - resident_bytes, budget // 4)
    tb = int(avail // max(bytes_per_row, 1))
    if tb >= align:
        tb = (tb // align) * align
    tb = max(min_rows, min(tb, _round_up(B, align), 2048))
    steps = _cdiv(B, tb)
    if steps == 1:
        if B >= 2 * align:                              # split so both TCs get work
            tb = _round_up(_cdiv(B, 2), align)
    elif steps % 2:
        cand = _cdiv(B, steps + 1)
        cand = _round_up(cand, align) if cand >= align else max(cand, min_rows)
        if cand >= min_rows and _cdiv(B, cand) % 2 == 0:
            tb = cand
    return tb


def _call_with_resident_rhs(kernel, *, out_shape, grid, x_spec, out_spec,
                            rhs_shape, compiler_params, cost_estimate,
                            x_arr, rhs_arr):
    """pallas_call with the weight operand resident in VMEM.  Tries the
    single-buffered spec first; falls back to the default constant-block spec
    if this Pallas version rejects it, so the kernel always runs."""
    def run(rhs_spec):
        return pl.pallas_call(
            kernel,
            out_shape=out_shape,
            grid=grid,
            in_specs=[x_spec, rhs_spec],
            out_specs=out_spec,
            compiler_params=compiler_params,
            cost_estimate=cost_estimate,
        )(x_arr, rhs_arr)

    try:
        return run(_resident_spec(rhs_shape, lambda b: (0, 0)))
    except Exception:
        return run(pl.BlockSpec(rhs_shape, lambda b: (0, 0)))


# ---------------------------------------------------------------------------
# Kernels
# ---------------------------------------------------------------------------
def _kron_batch_kernel(x_ref, at_ref, o_ref):
    # x_ref: (TB, HW)   at_ref: (HW, OWpad)   o_ref: (TB, OWpad)
    x = x_ref[...].astype(at_ref.dtype)
    o_ref[...] = jnp.dot(x, at_ref[...],
                         preferred_element_type=jnp.float32).astype(o_ref.dtype)


def _sep_batch_kernel(x_ref, awt_ref, o_ref):
    # x_ref: (TB, H, W)   awt_ref: (W, 2W)   o_ref: (TB, H, 4W)
    # Even/odd output rows are packed along lanes: o_ref[:, i, :2W] is output
    # row 2i and o_ref[:, i, 2W:] is row 2i+1 (free row-major reshape outside).
    tb, h, w = x_ref.shape
    x = x_ref[...].astype(awt_ref.dtype)
    # W-upsample: one lane-dense MXU matmul, contraction over W.
    xw = jnp.dot(x.reshape(tb * h, w), awt_ref[...],
                 preferred_element_type=jnp.float32).reshape(tb, h, 2 * w)
    # H-upsample: exact 2-tap stencil on the VPU; boundary rows get one tap.
    zero = jnp.zeros((tb, 1, 2 * w), jnp.float32)
    prev = jnp.concatenate([zero, xw[:, : h - 1, :]], axis=1)   # row i-1 (0 at top)
    nxt = jnp.concatenate([xw[:, 1:, :], zero], axis=1)         # row i+1 (0 at bottom)
    even = 0.75 * xw + 0.25 * prev                              # output rows 2i
    odd = 0.75 * xw + 0.25 * nxt                                # output rows 2i+1
    o_ref[...] = jnp.concatenate([even, odd], axis=-1).astype(o_ref.dtype)


# ---------------------------------------------------------------------------
# Wrapper
# ---------------------------------------------------------------------------
def bilinear_up(x, *, force_separable=False):
    """x: (N, C, D, H, W) -> (N, C, D, 2H, 2W); identical to BilinearUp.forward."""
    N, C, D, H, W = x.shape
    B = N * C * D
    HW = H * W
    x_item = jnp.dtype(x.dtype).itemsize
    a_dtype = jnp.bfloat16 if x.dtype == jnp.bfloat16 else jnp.float32
    a_item = jnp.dtype(a_dtype).itemsize
    align = 16 if x_item <= 2 else 8                  # bf16 packs 2 rows/sublane
    budget, vmem_limit = _vmem_budget_and_limit()
    params = pltpu.CompilerParams(dimension_semantics=("parallel",),
                                  vmem_limit_bytes=int(vmem_limit))

    A_h = _upsample_matrix(H)                          # (2H, H)
    A_w = _upsample_matrix(W)                          # (2W, W)

    # Keep the dense-kron fast path only while it stays HBM-bound
    # (it inflates FLOPs to 2*HW per output element).
    kron_max_hw = 256 if x_item <= 2 else 128
    use_kron = (not force_separable) and (HW <= kron_max_hw)

    if use_kron:
        OW = 4 * HW
        OWpad = _round_up(OW, 128)                     # lane-dense output stores
        A_t_np = np.zeros((HW, OWpad), dtype=np.float32)
        A_t_np[:, :OW] = np.kron(A_h, A_w).T           # taps products exact in bf16
        A_t = jnp.asarray(A_t_np, dtype=a_dtype)
        a_bytes = HW * OWpad * a_item

        # dbl-buffered (TB,HW) in + (TB,OWpad) out blocks + f32/cast temps per row
        per_row = 2 * (HW + OWpad) * x_item + 4 * OWpad + a_item * HW
        TB = _pick_batch_tile(B, per_row, a_bytes, budget, align, align)
        steps = _cdiv(B, TB)                           # partial last block is masked

        x_flat = x.reshape(B, HW)
        cost = pl.CostEstimate(
            flops=2 * B * HW * OWpad, transcendentals=0,
            bytes_accessed=B * (HW + OW) * x_item + a_bytes)

        out_flat = _call_with_resident_rhs(
            _kron_batch_kernel,
            out_shape=jax.ShapeDtypeStruct((B, OWpad), x.dtype),
            grid=(steps,),
            x_spec=pl.BlockSpec((TB, HW), lambda b: (b, 0)),
            out_spec=pl.BlockSpec((TB, OWpad), lambda b: (b, 0)),
            rhs_shape=(HW, OWpad),
            compiler_params=params,
            cost_estimate=cost,
            x_arr=x_flat,
            rhs_arr=A_t,
        )
        if OWpad != OW:
            out_flat = out_flat[:, :OW]
        return out_flat.reshape(N, C, D, 2 * H, 2 * W)

    # --- batched separable path: W-upsample on MXU, H-upsample as VPU stencil ---
    A_w_t = jnp.asarray(A_w.T, dtype=a_dtype)          # (W, 2W), resident in VMEM
    a_bytes = W * 2 * W * a_item

    # per-plane: dbl-buffered in (HW) + out (4HW) blocks + f32 temporaries.
    per_plane = 2 * (HW + 4 * HW) * x_item + 36 * HW
    TB = _pick_batch_tile(B, per_plane, a_bytes, budget, align, 1)
    steps = _cdiv(B, TB)
    # NOTE: planes too large for a single VMEM block (roughly > 768x768 f32)
    # would additionally need an H-tiled variant with one halo row per tile.

    x3 = x.reshape(B, H, W)
    cost = pl.CostEstimate(
        flops=2 * B * H * W * 2 * W + 6 * B * 4 * HW, transcendentals=0,
        bytes_accessed=B * 5 * HW * x_item + a_bytes)

    out_packed = _call_with_resident_rhs(
        _sep_batch_kernel,
        out_shape=jax.ShapeDtypeStruct((B, H, 4 * W), x.dtype),
        grid=(steps,),
        x_spec=pl.BlockSpec((TB, H, W), lambda b: (b, 0, 0)),
        out_spec=pl.BlockSpec((TB, H, 4 * W), lambda b: (b, 0, 0)),
        rhs_shape=(W, 2 * W),
        compiler_params=params,
        cost_estimate=cost,
        x_arr=x3,
        rhs_arr=A_w_t,
    )
    # (B, H, 4W) -> (N, C, D, 2H, 2W) is a free row-major reshape:
    # row i packs output rows [2i | 2i+1] side by side along lanes.
    return out_packed.reshape(N, C, D, 2 * H, 2 * W)


# ---------------------------------------------------------------------------
# Reference + tests
# ---------------------------------------------------------------------------
def _reference(x):
    N, C, D, H, W = x.shape
    A_h = jnp.asarray(_upsample_matrix(H))
    A_w = jnp.asarray(_upsample_matrix(W))
    xf = x.astype(jnp.float32).reshape(N * C * D, H, W)
    ref = jnp.einsum("oh,bhw,pw->bop", A_h, xf, A_w)
    return ref.reshape(N, C, D, 2 * H, 2 * W)


if __name__ == "__main__":
    # 1) Medium planes (HW=256, f32) -> batched separable path.
    x1 = jax.random.normal(jax.random.PRNGKey(0), (2, 4, 4, 16, 16),
                           dtype=jnp.float32)
    out1 = jax.block_until_ready(bilinear_up(x1))
    assert out1.shape == (2, 4, 4, 32, 32), out1.shape
    np.testing.assert_allclose(np.asarray(out1), np.asarray(_reference(x1)),
                               rtol=1e-4, atol=1e-4)

    # 2) Tiny planes (HW=64) with B % TB != 0 -> kron path, partial last block.
    x2 = jax.random.normal(jax.random.PRNGKey(1), (2, 3, 5, 8, 8),
                           dtype=jnp.float32)
    out2 = jax.block_until_ready(bilinear_up(x2))
    assert out2.shape == (2, 3, 5, 16, 16), out2.shape
    np.testing.assert_allclose(np.asarray(out2), np.asarray(_reference(x2)),
                               rtol=1e-4, atol=1e-4)

    # 3) bf16, HW=256 -> kron path with bf16 weights (taps exact in bf16).
    x3 = jax.random.normal(jax.random.PRNGKey(2),
                           (2, 4, 4, 16, 16)).astype(jnp.bfloat16)
    out3 = jax.block_until_ready(bilinear_up(x3))
    assert out3.shape == (2, 4, 4, 32, 32), out3.shape
    np.testing.assert_allclose(np.asarray(out3.astype(jnp.float32)),
                               np.asarray(_reference(x3)), rtol=5e-2, atol=5e-2)

    # 4) Separable path forced on tiny planes (partial last block again).
    out4 = jax.block_until_ready(bilinear_up(x2, force_separable=True))
    np.testing.assert_allclose(np.asarray(out4), np.asarray(_reference(x2)),
                               rtol=1e-4, atol=1e-4)

    print("KERNEL_OK")
</pallas_src>

<mosaic_0001>
module attributes {stable_mosaic.version = 11 : i64} {
  func.func @_sep_batch_kernel(%arg0: i32, %arg1: memref<16x16x16xf32, #tpu.memory_space<vmem>>, %arg2: memref<16x32xf32, #tpu.memory_space<vmem>>, %arg3: memref<16x16x64xf32, #tpu.memory_space<vmem>>) attributes {dimension_semantics = [#tpu.dimension_semantics<parallel>], iteration_bounds = array<i64: 2>, scalar_prefetch = 0 : i64, scratch_operands = 0 : i64, tpu.core_type = #tpu.core_type<tc>, window_params = [{transform_indices = @transform_0, window_bounds = array<i64: 16, 16, 16>}, {pipeline_mode = #tpu.pipeline_mode<synchronous>, transform_indices = @transform_1, window_bounds = array<i64: 16, 32>}, {transform_indices = @transform_2, window_bounds = array<i64: 16, 16, 64>}]} {
    %c0 = arith.constant 0 : index
    %c0_0 = arith.constant 0 : index
    %c0_1 = arith.constant 0 : index
    %0 = vector.load %arg1[%c0, %c0_0, %c0_1] : memref<16x16x16xf32, #tpu.memory_space<vmem>>, vector<16x16x16xf32>
    %1 = vector.shape_cast %0 : vector<16x16x16xf32> to vector<256x16xf32>
    %c0_2 = arith.constant 0 : index
    %c0_3 = arith.constant 0 : index
    %2 = vector.load %arg2[%c0_2, %c0_3] : memref<16x32xf32, #tpu.memory_space<vmem>>, vector<16x32xf32>
    %cst = arith.constant dense<0.000000e+00> : vector<256x32xf32>
    %3 = tpu.matmul %1, %2, %cst {dimension_numbers = #tpu.dot_dimension_numbers<[1], [0], [0], [1], [0, 0, 1, 1], [], []>} : vector<256x16xf32>, vector<16x32xf32>, vector<256x32xf32> -> vector<256x32xf32>
    %4 = vector.shape_cast %3 : vector<256x32xf32> to vector<16x16x32xf32>
    %cst_4 = arith.constant 0.000000e+00 : f32
    %5 = vector.broadcast %cst_4 : f32 to vector<16x1x32xf32>
    %6 = vector.extract_strided_slice %4 {offsets = [0, 0, 0], sizes = [16, 15, 32], strides = [1, 1, 1]} : vector<16x16x32xf32> to vector<16x15x32xf32>
    %7 = tpu.concatenate %5, %6 in 1 : vector<16x1x32xf32>, vector<16x15x32xf32> -> vector<16x16x32xf32>
    %8 = vector.extract_strided_slice %4 {offsets = [0, 1, 0], sizes = [16, 15, 32], strides = [1, 1, 1]} : vector<16x16x32xf32> to vector<16x15x32xf32>
    %9 = tpu.concatenate %8, %5 in 1 : vector<16x15x32xf32>, vector<16x1x32xf32> -> vector<16x16x32xf32>
    %cst_5 = arith.constant 7.500000e-01 : f32
    %10 = vector.broadcast %cst_5 : f32 to vector<16x16x32xf32>
    %11 = arith.mulf %10, %4 : vector<16x16x32xf32>
    %cst_6 = arith.constant 2.500000e-01 : f32
    %12 = vector.broadcast %cst_6 : f32 to vector<16x16x32xf32>
    %13 = arith.mulf %12, %7 : vector<16x16x32xf32>
    %14 = arith.addf %11, %13 : vector<16x16x32xf32>
    %cst_7 = arith.constant 7.500000e-01 : f32
    %15 = vector.broadcast %cst_7 : f32 to vector<16x16x32xf32>
    %16 = arith.mulf %15, %4 : vector<16x16x32xf32>
    %cst_8 = arith.constant 2.500000e-01 : f32
    %17 = vector.broadcast %cst_8 : f32 to vector<16x16x32xf32>
    %18 = arith.mulf %17, %9 : vector<16x16x32xf32>
    %19 = arith.addf %16, %18 : vector<16x16x32xf32>
    %20 = tpu.concatenate %14, %19 in 2 : vector<16x16x32xf32>, vector<16x16x32xf32> -> vector<16x16x64xf32>
    %c0_9 = arith.constant 0 : index
    %c0_10 = arith.constant 0 : index
    %c0_11 = arith.constant 0 : index
    %21 = vector.load %arg3[%c0_9, %c0_10, %c0_11] : memref<16x16x64xf32, #tpu.memory_space<vmem>>, vector<16x16x64xf32>
    tpu.vector_store %arg3[%c0_9, %c0_10, %c0_11], %20 {strides = array<i32>} : memref<16x16x64xf32, #tpu.memory_space<vmem>>, vector<16x16x64xf32>,
    return
  }
  func.func @transform_0(%arg0: i32) -> (i32, i32, i32) {
    %c0_i32 = arith.constant 0 : i32
    %c0_i32_0 = arith.constant 0 : i32
    %c0_i32_1 = arith.constant 0 : i32
    return %arg0, %c0_i32, %c0_i32_0 : i32, i32, i32
  }
  func.func @transform_1(%arg0: i32) -> (i32, i32) {
    %c0_i32 = arith.constant 0 : i32
    %c0_i32_0 = arith.constant 0 : i32
    %c0_i32_1 = arith.constant 0 : i32
    return %c0_i32, %c0_i32_0 : i32, i32
  }
  func.func @transform_2(%arg0: i32) -> (i32, i32, i32) {
    %c0_i32 = arith.constant 0 : i32
    %c0_i32_0 = arith.constant 0 : i32
    %c0_i32_1 = arith.constant 0 : i32
    return %arg0, %c0_i32, %c0_i32_0 : i32, i32, i32
  }
}

module attributes {stable_mosaic.version = 11 : i64} {
  func.func @_sep_batch_kernel(%arg0: i32, %arg1: memref<16x16x16xf32, #tpu.memory_space<vmem>>, %arg2: memref<16x32xf32, #tpu.memory_space<vmem>>, %arg3: memref<16x16x64xf32, #tpu.memory_space<vmem>>) attributes {dimension_semantics = [#tpu.dimension_semantics<parallel>], iteration_bounds = array<i64: 2>, scalar_prefetch = 0 : i64, scratch_operands = 0 : i64, tpu.core_type = #tpu.core_type<tc>, window_params = [{transform_indices = @transform_0, window_bounds = array<i64: 16, 16, 16>}, {pipeline_mode = #tpu.pipeline_mode<synchronous>, transform_indices = @transform_1, window_bounds = array<i64: 16, 32>}, {transform_indices = @transform_2, window_bounds = array<i64: 16, 16, 64>}]} {
    %c0 = arith.constant 0 : index
    %c0_0 = arith.constant 0 : index
    %c0_1 = arith.constant 0 : index
    %0 = vector.load %arg1[%c0, %c0_0, %c0_1] : memref<16x16x16xf32, #tpu.memory_space<vmem>>, vector<16x16x16xf32>
    %1 = vector.shape_cast %0 : vector<16x16x16xf32> to vector<256x16xf32>
    %c0_2 = arith.constant 0 : index
    %c0_3 = arith.constant 0 : index
    %2 = vector.load %arg2[%c0_2, %c0_3] : memref<16x32xf32, #tpu.memory_space<vmem>>, vector<16x32xf32>
    %cst = arith.constant dense<0.000000e+00> : vector<256x32xf32>
    %3 = tpu.matmul %1, %2, %cst {dimension_numbers = #tpu.dot_dimension_numbers<[1], [0], [0], [1], [0, 0, 1, 1], [], []>} : vector<256x16xf32>, vector<16x32xf32>, vector<256x32xf32> -> vector<256x32xf32>
    %4 = vector.shape_cast %3 : vector<256x32xf32> to vector<16x16x32xf32>
    %cst_4 = arith.constant 0.000000e+00 : f32
    %5 = vector.broadcast %cst_4 : f32 to vector<16x1x32xf32>
    %6 = vector.extract_strided_slice %4 {offsets = [0, 0, 0], sizes = [16, 15, 32], strides = [1, 1, 1]} : vector<16x16x32xf32> to vector<16x15x32xf32>
    %7 = tpu.concatenate %5, %6 in 1 : vector<16x1x32xf32>, vector<16x15x32xf32> -> vector<16x16x32xf32>
    %8 = vector.extract_strided_slice %4 {offsets = [0, 1, 0], sizes = [16, 15, 32], strides = [1, 1, 1]} : vector<16x16x32xf32> to vector<16x15x32xf32>
    %9 = tpu.concatenate %8, %5 in 1 : vector<16x15x32xf32>, vector<16x1x32xf32> -> vector<16x16x32xf32>
    %cst_5 = arith.constant 7.500000e-01 : f32
    %10 = vector.broadcast %cst_5 : f32 to vector<16x16x32xf32>
    %11 = arith.mulf %10, %4 : vector<16x16x32xf32>
    %cst_6 = arith.constant 2.500000e-01 : f32
    %12 = vector.broadcast %cst_6 : f32 to vector<16x16x32xf32>
    %13 = arith.mulf %12, %7 : vector<16x16x32xf32>
    %14 = arith.addf %11, %13 : vector<16x16x32xf32>
    %cst_7 = arith.constant 7.500000e-01 : f32
    %15 = vector.broadcast %cst_7 : f32 to vector<16x16x32xf32>
    %16 = arith.mulf %15, %4 : vector<16x16x32xf32>
    %cst_8 = arith.constant 2.500000e-01 : f32
    %17 = vector.broadcast %cst_8 : f32 to vector<16x16x32xf32>
    %18 = arith.mulf %17, %9 : vector<16x16x32xf32>
    %19 = arith.addf %16, %18 : vector<16x16x32xf32>
    %20 = tpu.concatenate %14, %19 in 2 : vector<16x16x32xf32>, vector<16x16x32xf32> -> vector<16x16x64xf32>
    %c0_9 = arith.constant 0 : index
    %c0_10 = arith.constant 0 : index
    %c0_11 = arith.constant 0 : index
    %21 = vector.load %arg3[%c0_9, %c0_10, %c0_11] : memref<16x16x64xf32, #tpu.memory_space<vmem>>, vector<16x16x64xf32>
    tpu.vector_store %arg3[%c0_9, %c0_10, %c0_11], %20 {strides = array<i32>} : memref<16x16x64xf32, #tpu.memory_space<vmem>>, vector<16x16x64xf32>,
    return
  }
  func.func @transform_0(%arg0: i32) -> (i32, i32, i32) {
    %c0_i32 = arith.constant 0 : i32
    %c0_i32_0 = arith.constant 0 : i32
    %c0_i32_1 = arith.constant 0 : i32
    return %arg0, %c0_i32, %c0_i32_0 : i32, i32, i32
  }
  func.func @transform_1(%arg0: i32) -> (i32, i32) {
    %c0_i32 = arith.constant 0 : i32
    %c0_i32_0 = arith.constant 0 : i32
    %c0_i32_1 = arith.constant 0 : i32
    return %c0_i32, %c0_i32_0 : i32, i32
  }
  func.func @transform_2(%arg0: i32) -> (i32, i32, i32) {
    %c0_i32 = arith.constant 0 : i32
    %c0_i32_0 = arith.constant 0 : i32
    %c0_i32_1 = arith.constant 0 : i32
    return %arg0, %c0_i32, %c0_i32_0 : i32, i32, i32
  }
}

</mosaic_0001>

<llo_original>
// kernel: tpu_custom_call.1
$region0: #{tpu_custom_call.1}
  #allocation0 [shape = 'u32[]', space=smem, size = 0x4, offset = 0x4, fixed_abs, tag = 'smem constant byte address 0x4 - core index']
  #allocation1 [shape = 'u32[144,128]{1,0:T(1,128)}', space=vmem, size = 0x12000, scoped, tag = 'internal scratch']
  %s0 = inlined_call_operand.vmem [shape: f32[32,16,16], index: 0, kind: input, shape index: {}]
  %s1 = inlined_call_operand.vmem [shape: f32[16,32], index: 1, kind: input, shape index: {}]
  %s2 = inlined_call_operand.hbm [shape: f32[32,16,64], index: 2, kind: output, shape index: {}]
  %s3 = sld [smem:[#allocation0]]
  $region41: #{tpu_custom_call.1} parent=0
    _
  %s5 = ssub.s32 1, %s3
  %s6 = scalar_select 0, %s5, %s3
  $region1: #{tpu_custom_call.1} parent=0
    #allocation2 [shape = 'u8[262144]{0}', space=vmem, size = 0x40000, scoped, tag = 'output window, operand 0']
    #allocation3 [shape = 's32[2]{0}', space=sflag, size = 0x8, scoped, tag = 'scoped memory for tpu_custom_call.1']
    %7 = vsyncpa [#allocation3], 0
    %s8 = scalar_lea.sflag [#allocation3], 1
    %9 = vsyncpa %s8, 0
    loop: start=0, step=1, limit=4
    $region2: #{tpu_custom_call.1} parent=1 // loop_pre_header
      _
    $region3: #{tpu_custom_call.1} parent=1 // loop_header
      %s11 = sphi 0, %s15
      %p12 = scmp.ge.s32.totalorder %s11, 4
      %s21 = sphi 0, %s23
      %s24 = sphi 0, %s21
      %s25 = sphi 0, %s24
      %s41 = sphi 0, %s25
      %s45 = sphi 0, %s45
      %s47 = sphi 0, %s45
      %s48 = sphi 0, %s47
      %s62 = sphi 0, %s48
      %s68 = sphi 0, %s70
      %s71 = sphi 0, %s68
      %s72 = sphi 0, %s71
      %s88 = sphi 0, %s72
    $region4: #{tpu_custom_call.1} parent=1 // loop_header_branch
      %14 = sbr.rel (%p12) target = $region8
    $region5: #{tpu_custom_call.1} parent=1 // loop_body
      %s16 = ssub.s32 %s11, 1
      %s17 = ssub.s32 %s11, 2
      %s18 = sadd.s32 %s11, 1
      %s19 = ssub.s32 %s11, %s18
      %p20 = scmp.eq.s32.totalorder %s19, 0
      %s22 = sadd.s32 %s21, 1
      %s23 = scalar_select %p20, %s21, %s22
      %p26 = pneg %p20
      %p27 = scmp.eq.s32.totalorder %s11, 1
      %p28 = por %p26, %p27
      %p29 = scmp.ne.s32.totalorder %s21, %s24
      %p30 = scmp.eq.s32.totalorder %s11, 0
      %p31 = por %p29, %p30
      %p32 = scmp.ne.s32.totalorder %s21, %s24
      %p33 = scmp.eq.s32.totalorder %s16, 1
      %p34 = por %p32, %p33
      %p35 = scmp.ne.s32.totalorder %s24, %s25
      %p36 = scmp.eq.s32.totalorder %s16, 0
      %p37 = por %p35, %p36
      %p38 = scmp.ne.s32.totalorder %s24, %s25
      %p39 = scmp.eq.s32.totalorder %s17, 1
      %p40 = por %p38, %p39
      %p42 = scmp.ne.s32.totalorder %s25, %s41
      %p43 = scmp.eq.s32.totalorder %s17, 0
      %p44 = por %p42, %p43
      %s46 = sadd.s32 %s45, 1
      %p49 = scmp.eq.s32.totalorder %s11, 1
      %p50 = scmp.ne.s32.totalorder %s45, %s47
      %p51 = scmp.eq.s32.totalorder %s11, 0
      %p52 = por %p50, %p51
      %p53 = scmp.ne.s32.totalorder %s45, %s47
      %p54 = scmp.eq.s32.totalorder %s16, 1
      %p55 = por %p53, %p54
      %p56 = scmp.ne.s32.totalorder %s47, %s48
      %p57 = scmp.eq.s32.totalorder %s16, 0
      %p58 = por %p56, %p57
      %p59 = scmp.ne.s32.totalorder %s47, %s48
      %p60 = scmp.eq.s32.totalorder %s17, 1
      %p61 = por %p59, %p60
      %p63 = scmp.ne.s32.totalorder %s48, %s62
      %p64 = scmp.eq.s32.totalorder %s17, 0
      %p65 = por %p63, %p64
      %s66 = ssub.s32 %s11, %s18
      %p67 = scmp.eq.s32.totalorder %s66, 0
      %s69 = sadd.s32 %s68, 1
      %s70 = scalar_select %p67, %s68, %s69
      %p73 = pneg %p67
      %p74 = scmp.eq.s32.totalorder %s11, 1
      %p75 = por %p73, %p74
      %p76 = scmp.ne.s32.totalorder %s68, %s71
      %p77 = scmp.eq.s32.totalorder %s11, 0
      %p78 = por %p76, %p77
      %p79 = scmp.ne.s32.totalorder %s68, %s71
      %p80 = scmp.eq.s32.totalorder %s16, 1
      %p81 = por %p79, %p80
      %p82 = scmp.ne.s32.totalorder %s71, %s72
      %p83 = scmp.eq.s32.totalorder %s16, 0
      %p84 = por %p82, %p83
      %p85 = scmp.ne.s32.totalorder %s71, %s72
      %p86 = scmp.eq.s32.totalorder %s17, 1
      %p87 = por %p85, %p86
      %p89 = scmp.ne.s32.totalorder %s72, %s88
      %p90 = scmp.eq.s32.totalorder %s17, 0
      %p91 = por %p89, %p90
      %p92 = scmp.le.s32.totalorder 1, %s11
      %p93 = scmp.lt.s32.totalorder %s11, 3
      %p94 = pnand %p92, %p93
      %p95 = pneg %p94
      // Predicated region
      $region9: #{tpu_custom_call.1} parent=5 // pred_check
        _
      $region10: #{tpu_custom_call.1} parent=5 // pred_check_branch
        %97 = sbr.rel (%p94) target = $region12
      $region11: #{tpu_custom_call.1} parent=5 // pred_region
        %s98 = ssub.s32 %s11, 1
        // Predicated region
        $region13: #{tpu_custom_call.1} parent=11 // pred_check
          %p99 = pneg %p58
        $region14: #{tpu_custom_call.1} parent=11 // pred_check_branch
          %101 = sbr.rel (%p99) target = $region16
        $region15: #{tpu_custom_call.1} parent=11 // pred_region
          _
        $region16: #{tpu_custom_call.1} parent=11 // pred_fallthru
          _
      $region12: #{tpu_custom_call.1} parent=5 // pred_fallthru
        _
      %p102 = scmp.lt.s32.totalorder %s11, 2
      // Predicated region
      $region17: #{tpu_custom_call.1} parent=5 // pred_check
        %p103 = pneg %p102
      $region18: #{tpu_custom_call.1} parent=5 // pred_check_branch
        %105 = sbr.rel (%p103) target = $region20
      $region19: #{tpu_custom_call.1} parent=5 // pred_region
        // Predicated region
        $region21: #{tpu_custom_call.1} parent=19 // pred_check
          %p106 = pneg %p31
        $region22: #{tpu_custom_call.1} parent=19 // pred_check_branch
          %108 = sbr.rel (%p106) target = $region24
        $region23: #{tpu_custom_call.1} parent=19 // pred_region
          %s109 = smul.u32 16, %s11
          %p110 = scmp.lt.s32.totalorder %s109, 31
          %s111 = scalar_select %p110, %s109, 31
          %s112 = smul.addr %s111, 2
          %s113 = smul.addr %s112, 8
          %s114 = scalar_lea.vmem %s0, %s113
          %s115 = smul.u32 16, %s11
        $region24: #{tpu_custom_call.1} parent=19 // pred_fallthru
          _
      $region20: #{tpu_custom_call.1} parent=5 // pred_fallthru
        _
      %p116 = scmp.le.s32.totalorder 1, %s11
      %p117 = scmp.lt.s32.totalorder %s11, 3
      %p118 = pnand %p116, %p117
      %p119 = pneg %p118
      // Predicated region
      $region25: #{tpu_custom_call.1} parent=5 // pred_check
        _
      $region26: #{tpu_custom_call.1} parent=5 // pred_check_branch
        %121 = sbr.rel (%p118) target = $region28
      $region27: #{tpu_custom_call.1} parent=5 // pred_region
        %s122 = ssub.s32 %s11, 1
        %s123 = smul.u32 16, %s16
        %p124 = scmp.lt.s32.totalorder %s123, 31
        %s125 = scalar_select %p124, %s123, 31
        %s126 = smul.addr %s125, 2
        %s127 = smul.addr %s126, 8
        %s128 = scalar_lea.vmem %s0, %s127
        %p129 = pneg %p37
        %p130 = pneg %p34
        %p131 = pneg %p58
        %p132 = pneg %p55
        %p133 = pneg %p84
        %p134 = pneg %p81
        %s135 = sand.u32 %s71, 1
        %s136 = scalar_lea.sflag [#allocation3], %s135
        %s137 = sand.u32 %s71, 1
        %s138 = smul.addr %s137, 256
        %s139 = scalar_lea.vmem [#allocation2], %s138
        %s140 = smul.u32 16, %s16
        %p141 = scmp.lt.s32.totalorder %s140, 31
        %s142 = scalar_select %p141, %s140, 31
        %s143 = smul.addr %s142, 2
        %s144 = smul.addr %s143, 8
        %s145 = scalar_lea.vmem %s0, %s144
        %s146 = smul.u32 16, %s16
        %s147 = smul.u32 16, %s16
        %v148 = vld [vmem:[%s145] sm:$0xff]
        %v149 = vld [vmem:[%s145 + $0x8] sm:$0xff]
        %v150 = vld [vmem:[%s145 + $0x10] sm:$0xff]
        %v151 = vld [vmem:[%s145 + $0x18] sm:$0xff]
        %v152 = vld [vmem:[%s145 + $0x20] sm:$0xff]
        %v153 = vld [vmem:[%s145 + $0x28] sm:$0xff]
        %v154 = vld [vmem:[%s145 + $0x30] sm:$0xff]
        %v155 = vld [vmem:[%s145 + $0x38] sm:$0xff]
        %v156 = vld [vmem:[%s145 + $0x40] sm:$0xff]
        %v157 = vld [vmem:[%s145 + $0x48] sm:$0xff]
        %v158 = vld [vmem:[%s145 + $0x50] sm:$0xff]
        %v159 = vld [vmem:[%s145 + $0x58] sm:$0xff]
        %v160 = vld [vmem:[%s145 + $0x60] sm:$0xff]
        %v161 = vld [vmem:[%s145 + $0x68] sm:$0xff]
        %v162 = vld [vmem:[%s145 + $0x70] sm:$0xff]
        %v163 = vld [vmem:[%s145 + $0x78] sm:$0xff]
        %v164 = vld [vmem:[%s145 + $0x80] sm:$0xff]
        %v165 = vld [vmem:[%s145 + $0x88] sm:$0xff]
        %v166 = vld [vmem:[%s145 + $0x90] sm:$0xff]
        %v167 = vld [vmem:[%s145 + $0x98] sm:$0xff]
        %v168 = vld [vmem:[%s145 + $0xa0] sm:$0xff]
        %v169 = vld [vmem:[%s145 + $0xa8] sm:$0xff]
        %v170 = vld [vmem:[%s145 + $0xb0] sm:$0xff]
        %v171 = vld [vmem:[%s145 + $0xb8] sm:$0xff]
        %v172 = vld [vmem:[%s145 + $0xc0] sm:$0xff]
        %v173 = vld [vmem:[%s145 + $0xc8] sm:$0xff]
        %v174 = vld [vmem:[%s145 + $0xd0] sm:$0xff]
        %v175 = vld [vmem:[%s145 + $0xd8] sm:$0xff]
        %v176 = vld [vmem:[%s145 + $0xe0] sm:$0xff]
        %v177 = vld [vmem:[%s145 + $0xe8] sm:$0xff]
        %v178 = vld [vmem:[%s145 + $0xf0] sm:$0xff]
        %v179 = vld [vmem:[%s145 + $0xf8] sm:$0xff]
        %v180 = vld [vmem:[%s1] sm:$0xff]
        %v181 = vld [vmem:[%s1 + $0x8] sm:$0xff]
        %vm182 = vcmask 130048
        %v184 = vsel %vm182, %v148, 0
        %v187 = vsel %vm182, %v149, 0
        %v190 = vsel %vm182, %v150, 0
        %v193 = vsel %vm182, %v151, 0
        %v196 = vsel %vm182, %v152, 0
        %v199 = vsel %vm182, %v153, 0
        %v202 = vsel %vm182, %v154, 0
        %v205 = vsel %vm182, %v155, 0
        %v208 = vsel %vm182, %v156, 0
        %v211 = vsel %vm182, %v157, 0
        %v214 = vsel %vm182, %v158, 0
        %v217 = vsel %vm182, %v159, 0
        %v220 = vsel %vm182, %v160, 0
        %v223 = vsel %vm182, %v161, 0
        %v226 = vsel %vm182, %v162, 0
        %v229 = vsel %vm182, %v163, 0
        %v232 = vsel %vm182, %v164, 0
        %v235 = vsel %vm182, %v165, 0
        %v238 = vsel %vm182, %v166, 0
        %v241 = vsel %vm182, %v167, 0
        %v244 = vsel %vm182, %v168, 0
        %v247 = vsel %vm182, %v169, 0
        %v250 = vsel %vm182, %v170, 0
        %v253 = vsel %vm182, %v171, 0
        %v256 = vsel %vm182, %v172, 0
        %v259 = vsel %vm182, %v173, 0
        %v262 = vsel %vm182, %v174, 0
        %v265 = vsel %vm182, %v175, 0
        %v268 = vsel %vm182, %v176, 0
        %v271 = vsel %vm182, %v177, 0
        %v274 = vsel %vm182, %v178, 0
        %v277 = vsel %vm182, %v179, 0
        %279 = vmatprep.subr.mxu0 0.0
        %280 = vmatpush1.msra.mxu0 0.0
        %281 = vmatprep.subr.mxu0 0.0
        %282 = vmatpush1.msra.mxu0 0.0
        %283 = vmatprep.subr.mxu0 0.0
        %284 = vmatpush1.msra.mxu0 0.0
        %285 = vmatprep.subr.mxu0 0.0
        %286 = vmatpush1.msra.mxu0 0.0
        %287 = vmatprep.subr.mxu0 0.0
        %288 = vmatpush1.msra.mxu0 0.0
        %289 = vmatprep.subr.mxu0 0.0
        %290 = vmatpush1.msra.mxu0 0.0
        %291 = vmatprep.subr.mxu0 0.0
        %292 = vmatpush1.msra.mxu0 0.0
        %293 = vmatprep.subr.mxu0 0.0
        %294 = vmatpush1.msra.mxu0 0.0
        %295 = vmatprep.subr.mxu0 0.0
        %296 = vmatpush1.msra.mxu0 0.0
        %297 = vmatprep.subr.mxu0 0.0
        %298 = vmatpush1.msra.mxu0 0.0
        %299 = vmatprep.subr.mxu0 0.0
        %300 = vmatpush1.msra.mxu0 0.0
        %301 = vmatprep.subr.mxu0 0.0
        %302 = vmatpush1.msra.mxu0 0.0
        %303 = vmatprep.subr.mxu0 0.0
        %304 = vmatpush1.msra.mxu0 0.0
        %305 = vmatprep.subr.mxu0 0.0
        %306 = vmatpush1.msra.mxu0 0.0
        %307 = vmatprep.subr.mxu0 0.0
        %308 = vmatpush1.msra.mxu0 %v181
        %309 = vmatprep.subr.mxu0 0.0
        %310 = vmatpush1.msra.mxu0 %v180
        %311 = vmatprep.subr.mxu0 0.0
        %312 = vmatpush2.msra.mxu0 0.0
        %313 = vmatprep.subr.mxu0 0.0
        %314 = vmatpush2.msra.mxu0 0.0
        %315 = vmatprep.subr.mxu0 0.0
        %316 = vmatpush2.msra.mxu0 0.0
        %317 = vmatprep.subr.mxu0 0.0
        %318 = vmatpush2.msra.mxu0 0.0
        %319 = vmatprep.subr.mxu0 0.0
        %320 = vmatpush2.msra.mxu0 0.0
        %321 = vmatprep.subr.mxu0 0.0
        %322 = vmatpush2.msra.mxu0 0.0
        %323 = vmatprep.subr.mxu0 0.0
        %324 = vmatpush2.msra.mxu0 0.0
        %325 = vmatprep.subr.mxu0 0.0
        %326 = vmatpush2.msra.mxu0 0.0
        %327 = vmatprep.subr.mxu0 0.0
        %328 = vmatpush2.msra.mxu0 0.0
        %329 = vmatprep.subr.mxu0 0.0
        %330 = vmatpush2.msra.mxu0 0.0
        %331 = vmatprep.subr.mxu0 0.0
        %332 = vmatpush2.msra.mxu0 0.0
        %333 = vmatprep.subr.mxu0 0.0
        %334 = vmatpush2.msra.mxu0 0.0
        %335 = vmatprep.subr.mxu0 0.0
        %336 = vmatpush2.msra.mxu0 0.0
        %337 = vmatprep.subr.mxu0 0.0
        %338 = vmatpush2.msra.mxu0 0.0
        %339 = vmatprep.subr.mxu0 0.0
        %340 = vmatpush2.msra.mxu0 0.0
        %341 = vmatprep.subr.mxu0 0.0
        %342 = vmatpush2.msra.mxu0 0.0
        %343 = vmatprep.mubr.f32.mxu0 0.0
        %344 = vmatmul.mubr.f32.gmra.mxu0 %v184
        %v345 = vpop.f32.mrf.mxu0
        %v346 = vadd.f32 0.0, %v345
        %v347 = vpop.f32.mrf.mxu0
        %348 = vmatprep.mubr.f32.mxu0 0.0
        %349 = vmatmul.mubr.f32.gmra.mxu0 %v187
        %v350 = vpop.f32.mrf.mxu0
        %v351 = vadd.f32 0.0, %v350
        %v352 = vpop.f32.mrf.mxu0
        %353 = vmatprep.mubr.f32.mxu0 0.0
        %354 = vmatmul.mubr.f32.gmra.mxu0 %v190
        %v355 = vpop.f32.mrf.mxu0
        %v356 = vadd.f32 0.0, %v355
        %v357 = vpop.f32.mrf.mxu0
        %358 = vmatprep.mubr.f32.mxu0 0.0
        %359 = vmatmul.mubr.f32.gmra.mxu0 %v193
        %v360 = vpop.f32.mrf.mxu0
        %v361 = vadd.f32 0.0, %v360
        %v362 = vpop.f32.mrf.mxu0
        %363 = vmatprep.mubr.f32.mxu0 0.0
        %364 = vmatmul.mubr.f32.gmra.mxu0 %v196
        %v365 = vpop.f32.mrf.mxu0
        %v366 = vadd.f32 0.0, %v365
        %v367 = vpop.f32.mrf.mxu0
        %368 = vmatprep.mubr.f32.mxu0 0.0
        %369 = vmatmul.mubr.f32.gmra.mxu0 %v199
        %v370 = vpop.f32.mrf.mxu0
        %v371 = vadd.f32 0.0, %v370
        %v372 = vpop.f32.mrf.mxu0
        %373 = vmatprep.mubr.f32.mxu0 0.0
        %374 = vmatmul.mubr.f32.gmra.mxu0 %v202
        %v375 = vpop.f32.mrf.mxu0
        %v376 = vadd.f32 0.0, %v375
        %v377 = vpop.f32.mrf.mxu0
        %378 = vmatprep.mubr.f32.mxu0 0.0
        %379 = vmatmul.mubr.f32.gmra.mxu0 %v205
        %v380 = vpop.f32.mrf.mxu0
        %v381 = vadd.f32 0.0, %v380
        %v382 = vpop.f32.mrf.mxu0
        %383 = vmatprep.mubr.f32.mxu0 0.0
        %384 = vmatmul.mubr.f32.gmra.mxu0 %v208
        %v385 = vpop.f32.mrf.mxu0
        %v386 = vadd.f32 0.0, %v385
        %v387 = vpop.f32.mrf.mxu0
        %388 = vmatprep.mubr.f32.mxu0 0.0
        %389 = vmatmul.mubr.f32.gmra.mxu0 %v211
        %v390 = vpop.f32.mrf.mxu0
        %v391 = vadd.f32 0.0, %v390
        %v392 = vpop.f32.mrf.mxu0
        %393 = vmatprep.mubr.f32.mxu0 0.0
        %394 = vmatmul.mubr.f32.gmra.mxu0 %v214
        %v395 = vpop.f32.mrf.mxu0
        %v396 = vadd.f32 0.0, %v395
        %v397 = vpop.f32.mrf.mxu0
        %398 = vmatprep.mubr.f32.mxu0 0.0
        %399 = vmatmul.mubr.f32.gmra.mxu0 %v217
        %v400 = vpop.f32.mrf.mxu0
        %v401 = vadd.f32 0.0, %v400
        %v402 = vpop.f32.mrf.mxu0
        %403 = vmatprep.mubr.f32.mxu0 0.0
        %404 = vmatmul.mubr.f32.gmra.mxu0 %v220
        %v405 = vpop.f32.mrf.mxu0
        %v406 = vadd.f32 0.0, %v405
        %v407 = vpop.f32.mrf.mxu0
        %408 = vmatprep.mubr.f32.mxu0 0.0
        %409 = vmatmul.mubr.f32.gmra.mxu0 %v223
        %v410 = vpop.f32.mrf.mxu0
        %v411 = vadd.f32 0.0, %v410
        %v412 = vpop.f32.mrf.mxu0
        %413 = vmatprep.mubr.f32.mxu0 0.0
        %414 = vmatmul.mubr.f32.gmra.mxu0 %v226
        %v415 = vpop.f32.mrf.mxu0
        %v416 = vadd.f32 0.0, %v415
        %v417 = vpop.f32.mrf.mxu0
        %418 = vmatprep.mubr.f32.mxu0 0.0
        %419 = vmatmul.mubr.f32.gmra.mxu0 %v229
        %v420 = vpop.f32.mrf.mxu0
        %v421 = vadd.f32 0.0, %v420
        %v422 = vpop.f32.mrf.mxu0
        %423 = vmatprep.mubr.f32.mxu0 0.0
        %424 = vmatmul.mubr.f32.gmra.mxu0 %v232
        %v425 = vpop.f32.mrf.mxu0
        %v426 = vadd.f32 0.0, %v425
        %v427 = vpop.f32.mrf.mxu0
        %428 = vmatprep.mubr.f32.mxu0 0.0
        %429 = vmatmul.mubr.f32.gmra.mxu0 %v235
        %v430 = vpop.f32.mrf.mxu0
        %v431 = vadd.f32 0.0, %v430
        %v432 = vpop.f32.mrf.mxu0
        %433 = vmatprep.mubr.f32.mxu0 0.0
        %434 = vmatmul.mubr.f32.gmra.mxu0 %v238
        %v435 = vpop.f32.mrf.mxu0
        %v436 = vadd.f32 0.0, %v435
        %v437 = vpop.f32.mrf.mxu0
        %438 = vmatprep.mubr.f32.mxu0 0.0
        %439 = vmatmul.mubr.f32.gmra.mxu0 %v241
        %v440 = vpop.f32.mrf.mxu0
        %v441 = vadd.f32 0.0, %v440
        %v442 = vpop.f32.mrf.mxu0
        %443 = vmatprep.mubr.f32.mxu0 0.0
        %444 = vmatmul.mubr.f32.gmra.mxu0 %v244
        %v445 = vpop.f32.mrf.mxu0
        %v446 = vadd.f32 0.0, %v445
        %v447 = vpop.f32.mrf.mxu0
        %448 = vmatprep.mubr.f32.mxu0 0.0
        %449 = vmatmul.mubr.f32.gmra.mxu0 %v247
        %v450 = vpop.f32.mrf.mxu0
        %v451 = vadd.f32 0.0, %v450
        %v452 = vpop.f32.mrf.mxu0
        %453 = vmatprep.mubr.f32.mxu0 0.0
        %454 = vmatmul.mubr.f32.gmra.mxu0 %v250
        %v455 = vpop.f32.mrf.mxu0
        %v456 = vadd.f32 0.0, %v455
        %v457 = vpop.f32.mrf.mxu0
        %458 = vmatprep.mubr.f32.mxu0 0.0
        %459 = vmatmul.mubr.f32.gmra.mxu0 %v253
        %v460 = vpop.f32.mrf.mxu0
        %v461 = vadd.f32 0.0, %v460
        %v462 = vpop.f32.mrf.mxu0
        %463 = vmatprep.mubr.f32.mxu0 0.0
        %464 = vmatmul.mubr.f32.gmra.mxu0 %v256
        %v465 = vpop.f32.mrf.mxu0
        %v466 = vadd.f32 0.0, %v465
        %v467 = vpop.f32.mrf.mxu0
        %468 = vmatprep.mubr.f32.mxu0 0.0
        %469 = vmatmul.mubr.f32.gmra.mxu0 %v259
        %v470 = vpop.f32.mrf.mxu0
        %v471 = vadd.f32 0.0, %v470
        %v472 = vpop.f32.mrf.mxu0
        %473 = vmatprep.mubr.f32.mxu0 0.0
        %474 = vmatmul.mubr.f32.gmra.mxu0 %v262
        %v475 = vpop.f32.mrf.mxu0
        %v476 = vadd.f32 0.0, %v475
        %v477 = vpop.f32.mrf.mxu0
        %478 = vmatprep.mubr.f32.mxu0 0.0
        %479 = vmatmul.mubr.f32.gmra.mxu0 %v265
        %v480 = vpop.f32.mrf.mxu0
        %v481 = vadd.f32 0.0, %v480
        %v482 = vpop.f32.mrf.mxu0
        %483 = vmatprep.mubr.f32.mxu0 0.0
        %484 = vmatmul.mubr.f32.gmra.mxu0 %v268
        %v485 = vpop.f32.mrf.mxu0
        %v486 = vadd.f32 0.0, %v485
        %v487 = vpop.f32.mrf.mxu0
        %488 = vmatprep.mubr.f32.mxu0 0.0
        %489 = vmatmul.mubr.f32.gmra.mxu0 %v271
        %v490 = vpop.f32.mrf.mxu0
        %v491 = vadd.f32 0.0, %v490
        %v492 = vpop.f32.mrf.mxu0
        %493 = vmatprep.mubr.f32.mxu0 0.0
        %494 = vmatmul.mubr.f32.gmra.mxu0 %v274
        %v495 = vpop.f32.mrf.mxu0
        %v496 = vadd.f32 0.0, %v495
        %v497 = vpop.f32.mrf.mxu0
        %498 = vmatprep.mubr.f32.mxu0 0.0
        %499 = vmatmul.mubr.f32.gmra.mxu0 %v277
        %v500 = vpop.f32.mrf.mxu0
        %v501 = vadd.f32 0.0, %v500
        %v502 = vpop.f32.mrf.mxu0
        %503 = vdwg.mxu0
        %vm536 = vcmask 1040384
        %v537 = vrot.slane %v346, 7
        %v538 = vrot.slane %v351, 7
        %v539 = vsel %vm536, %v537, %v538
        %v540 = vrot.slane %v356, 7
        %v541 = vrot.slane %v361, 7
        %v542 = vsel %vm536, %v540, %v541
        %v543 = vrot.slane %v366, 7
        %v544 = vrot.slane %v371, 7
        %v545 = vsel %vm536, %v543, %v544
        %v546 = vrot.slane %v376, 7
        %v547 = vrot.slane %v381, 7
        %v548 = vsel %vm536, %v546, %v547
        %v549 = vrot.slane %v386, 7
        %v550 = vrot.slane %v391, 7
        %v551 = vsel %vm536, %v549, %v550
        %v552 = vrot.slane %v396, 7
        %v553 = vrot.slane %v401, 7
        %v554 = vsel %vm536, %v552, %v553
        %v555 = vrot.slane %v406, 7
        %v556 = vrot.slane %v411, 7
        %v557 = vsel %vm536, %v555, %v556
        %v558 = vrot.slane %v416, 7
        %v559 = vrot.slane %v421, 7
        %v560 = vsel %vm536, %v558, %v559
        %v561 = vrot.slane %v426, 7
        %v562 = vrot.slane %v431, 7
        %v563 = vsel %vm536, %v561, %v562
        %v564 = vrot.slane %v436, 7
        %v565 = vrot.slane %v441, 7
        %v566 = vsel %vm536, %v564, %v565
        %v567 = vrot.slane %v446, 7
        %v568 = vrot.slane %v451, 7
        %v569 = vsel %vm536, %v567, %v568
        %v570 = vrot.slane %v456, 7
        %v571 = vrot.slane %v461, 7
        %v572 = vsel %vm536, %v570, %v571
        %v573 = vrot.slane %v466, 7
        %v574 = vrot.slane %v471, 7
        %v575 = vsel %vm536, %v573, %v574
        %v576 = vrot.slane %v476, 7
        %v577 = vrot.slane %v481, 7
        %v578 = vsel %vm536, %v576, %v577
        %v579 = vrot.slane %v486, 7
        %v580 = vrot.slane %v491, 7
        %v581 = vsel %vm536, %v579, %v580
        %v582 = vrot.slane %v496, 7
        %v583 = vrot.slane %v501, 7
        %v584 = vsel %vm536, %v582, %v583
        %v617 = vsel %vm536, 0.0, %v537
        %v618 = vsel %vm536, 0.0, %v540
        %v619 = vsel %vm536, 0.0, %v543
        %v620 = vsel %vm536, 0.0, %v546
        %v621 = vsel %vm536, 0.0, %v549
        %v622 = vsel %vm536, 0.0, %v552
        %v623 = vsel %vm536, 0.0, %v555
        %v624 = vsel %vm536, 0.0, %v558
        %v625 = vsel %vm536, 0.0, %v561
        %v626 = vsel %vm536, 0.0, %v564
        %v627 = vsel %vm536, 0.0, %v567
        %v628 = vsel %vm536, 0.0, %v570
        %v629 = vsel %vm536, 0.0, %v573
        %v630 = vsel %vm536, 0.0, %v576
        %v631 = vsel %vm536, 0.0, %v579
        %v632 = vsel %vm536, 0.0, %v582
        %vm633 = vcmask 1046528
        %v634 = vrot.slane %v346, 1
        %v635 = vrot.slane %v351, 1
        %v636 = vsel %vm633, %v634, %v635
        %v637 = vrot.slane %v356, 1
        %v638 = vrot.slane %v361, 1
        %v639 = vsel %vm633, %v637, %v638
        %v640 = vrot.slane %v366, 1
        %v641 = vrot.slane %v371, 1
        %v642 = vsel %vm633, %v640, %v641
        %v643 = vrot.slane %v376, 1
        %v644 = vrot.slane %v381, 1
        %v645 = vsel %vm633, %v643, %v644
        %v646 = vrot.slane %v386, 1
        %v647 = vrot.slane %v391, 1
        %v648 = vsel %vm633, %v646, %v647
        %v649 = vrot.slane %v396, 1
        %v650 = vrot.slane %v401, 1
        %v651 = vsel %vm633, %v649, %v650
        %v652 = vrot.slane %v406, 1
        %v653 = vrot.slane %v411, 1
        %v654 = vsel %vm633, %v652, %v653
        %v655 = vrot.slane %v416, 1
        %v656 = vrot.slane %v421, 1
        %v657 = vsel %vm633, %v655, %v656
        %v658 = vrot.slane %v426, 1
        %v659 = vrot.slane %v431, 1
        %v660 = vsel %vm633, %v658, %v659
        %v661 = vrot.slane %v436, 1
        %v662 = vrot.slane %v441, 1
        %v663 = vsel %vm633, %v661, %v662
        %v664 = vrot.slane %v446, 1
        %v665 = vrot.slane %v451, 1
        %v666 = vsel %vm633, %v664, %v665
        %v667 = vrot.slane %v456, 1
        %v668 = vrot.slane %v461, 1
        %v669 = vsel %vm633, %v667, %v668
        %v670 = vrot.slane %v466, 1
        %v671 = vrot.slane %v471, 1
        %v672 = vsel %vm633, %v670, %v671
        %v673 = vrot.slane %v476, 1
        %v674 = vrot.slane %v481, 1
        %v675 = vsel %vm633, %v673, %v674
        %v676 = vrot.slane %v486, 1
        %v677 = vrot.slane %v491, 1
        %v678 = vsel %vm633, %v676, %v677
        %v679 = vrot.slane %v496, 1
        %v680 = vrot.slane %v501, 1
        %v681 = vsel %vm633, %v679, %v680
        %v714 = vsel %vm633, %v635, 0.0
        %v715 = vsel %vm633, %v638, 0.0
        %v716 = vsel %vm633, %v641, 0.0
        %v717 = vsel %vm633, %v644, 0.0
        %v718 = vsel %vm633, %v647, 0.0
        %v719 = vsel %vm633, %v650, 0.0
        %v720 = vsel %vm633, %v653, 0.0
        %v721 = vsel %vm633, %v656, 0.0
        %v722 = vsel %vm633, %v659, 0.0
        %v723 = vsel %vm633, %v662, 0.0
        %v724 = vsel %vm633, %v665, 0.0
        %v725 = vsel %vm633, %v668, 0.0
        %v726 = vsel %vm633, %v671, 0.0
        %v727 = vsel %vm633, %v674, 0.0
        %v728 = vsel %vm633, %v677, 0.0
        %v729 = vsel %vm633, %v680, 0.0
        %v730 = vmul.f32 %v346, 0.75
        %v731 = vmul.f32 %v351, 0.75
        %v732 = vmul.f32 %v356, 0.75
        %v733 = vmul.f32 %v361, 0.75
        %v734 = vmul.f32 %v366, 0.75
        %v735 = vmul.f32 %v371, 0.75
        %v736 = vmul.f32 %v376, 0.75
        %v737 = vmul.f32 %v381, 0.75
        %v738 = vmul.f32 %v386, 0.75
        %v739 = vmul.f32 %v391, 0.75
        %v740 = vmul.f32 %v396, 0.75
        %v741 = vmul.f32 %v401, 0.75
        %v742 = vmul.f32 %v406, 0.75
        %v743 = vmul.f32 %v411, 0.75
        %v744 = vmul.f32 %v416, 0.75
        %v745 = vmul.f32 %v421, 0.75
        %v746 = vmul.f32 %v426, 0.75
        %v747 = vmul.f32 %v431, 0.75
        %v748 = vmul.f32 %v436, 0.75
        %v749 = vmul.f32 %v441, 0.75
        %v750 = vmul.f32 %v446, 0.75
        %v751 = vmul.f32 %v451, 0.75
        %v752 = vmul.f32 %v456, 0.75
        %v753 = vmul.f32 %v461, 0.75
        %v754 = vmul.f32 %v466, 0.75
        %v755 = vmul.f32 %v471, 0.75
        %v756 = vmul.f32 %v476, 0.75
        %v757 = vmul.f32 %v481, 0.75
        %v758 = vmul.f32 %v486, 0.75
        %v759 = vmul.f32 %v491, 0.75
        %v760 = vmul.f32 %v496, 0.75
        %v761 = vmul.f32 %v501, 0.75
        %v762 = vmul.f32 %v617, 0.25
        %v763 = vmul.f32 %v539, 0.25
        %v764 = vmul.f32 %v618, 0.25
        %v765 = vmul.f32 %v542, 0.25
        %v766 = vmul.f32 %v619, 0.25
        %v767 = vmul.f32 %v545, 0.25
        %v768 = vmul.f32 %v620, 0.25
        %v769 = vmul.f32 %v548, 0.25
        %v770 = vmul.f32 %v621, 0.25
        %v771 = vmul.f32 %v551, 0.25
        %v772 = vmul.f32 %v622, 0.25
        %v773 = vmul.f32 %v554, 0.25
        %v774 = vmul.f32 %v623, 0.25
        %v775 = vmul.f32 %v557, 0.25
        %v776 = vmul.f32 %v624, 0.25
        %v777 = vmul.f32 %v560, 0.25
        %v778 = vmul.f32 %v625, 0.25
        %v779 = vmul.f32 %v563, 0.25
        %v780 = vmul.f32 %v626, 0.25
        %v781 = vmul.f32 %v566, 0.25
        %v782 = vmul.f32 %v627, 0.25
        %v783 = vmul.f32 %v569, 0.25
        %v784 = vmul.f32 %v628, 0.25
        %v785 = vmul.f32 %v572, 0.25
        %v786 = vmul.f32 %v629, 0.25
        %v787 = vmul.f32 %v575, 0.25
        %v788 = vmul.f32 %v630, 0.25
        %v789 = vmul.f32 %v578, 0.25
        %v790 = vmul.f32 %v631, 0.25
        %v791 = vmul.f32 %v581, 0.25
        %v792 = vmul.f32 %v632, 0.25
        %v793 = vmul.f32 %v584, 0.25
        %v794 = vadd.f32 %v730, %v762
        %v795 = vadd.f32 %v731, %v763
        %v796 = vadd.f32 %v732, %v764
        %v797 = vadd.f32 %v733, %v765
        %v798 = vadd.f32 %v734, %v766
        %v799 = vadd.f32 %v735, %v767
        %v800 = vadd.f32 %v736, %v768
        %v801 = vadd.f32 %v737, %v769
        %v802 = vadd.f32 %v738, %v770
        %v803 = vadd.f32 %v739, %v771
        %v804 = vadd.f32 %v740, %v772
        %v805 = vadd.f32 %v741, %v773
        %v806 = vadd.f32 %v742, %v774
        %v807 = vadd.f32 %v743, %v775
        %v808 = vadd.f32 %v744, %v776
        %v809 = vadd.f32 %v745, %v777
        %v810 = vadd.f32 %v746, %v778
        %v811 = vadd.f32 %v747, %v779
        %v812 = vadd.f32 %v748, %v780
        %v813 = vadd.f32 %v749, %v781
        %v814 = vadd.f32 %v750, %v782
        %v815 = vadd.f32 %v751, %v783
        %v816 = vadd.f32 %v752, %v784
        %v817 = vadd.f32 %v753, %v785
        %v818 = vadd.f32 %v754, %v786
        %v819 = vadd.f32 %v755, %v787
        %v820 = vadd.f32 %v756, %v788
        %v821 = vadd.f32 %v757, %v789
        %v822 = vadd.f32 %v758, %v790
        %v823 = vadd.f32 %v759, %v791
        %v824 = vadd.f32 %v760, %v792
        %v825 = vadd.f32 %v761, %v793
        %v826 = vmul.f32 %v636, 0.25
        %v827 = vmul.f32 %v714, 0.25
        %v828 = vmul.f32 %v639, 0.25
        %v829 = vmul.f32 %v715, 0.25
        %v830 = vmul.f32 %v642, 0.25
        %v831 = vmul.f32 %v716, 0.25
        %v832 = vmul.f32 %v645, 0.25
        %v833 = vmul.f32 %v717, 0.25
        %v834 = vmul.f32 %v648, 0.25
        %v835 = vmul.f32 %v718, 0.25
        %v836 = vmul.f32 %v651, 0.25
        %v837 = vmul.f32 %v719, 0.25
        %v838 = vmul.f32 %v654, 0.25
        %v839 = vmul.f32 %v720, 0.25
        %v840 = vmul.f32 %v657, 0.25
        %v841 = vmul.f32 %v721, 0.25
        %v842 = vmul.f32 %v660, 0.25
        %v843 = vmul.f32 %v722, 0.25
        %v844 = vmul.f32 %v663, 0.25
        %v845 = vmul.f32 %v723, 0.25
        %v846 = vmul.f32 %v666, 0.25
        %v847 = vmul.f32 %v724, 0.25
        %v848 = vmul.f32 %v669, 0.25
        %v849 = vmul.f32 %v725, 0.25
        %v850 = vmul.f32 %v672, 0.25
        %v851 = vmul.f32 %v726, 0.25
        %v852 = vmul.f32 %v675, 0.25
        %v853 = vmul.f32 %v727, 0.25
        %v854 = vmul.f32 %v678, 0.25
        %v855 = vmul.f32 %v728, 0.25
        %v856 = vmul.f32 %v681, 0.25
        %v857 = vmul.f32 %v729, 0.25
        %v858 = vadd.f32 %v730, %v826
        %v859 = vadd.f32 %v731, %v827
        %v860 = vadd.f32 %v732, %v828
        %v861 = vadd.f32 %v733, %v829
        %v862 = vadd.f32 %v734, %v830
        %v863 = vadd.f32 %v735, %v831
        %v864 = vadd.f32 %v736, %v832
        %v865 = vadd.f32 %v737, %v833
        %v866 = vadd.f32 %v738, %v834
        %v867 = vadd.f32 %v739, %v835
        %v868 = vadd.f32 %v740, %v836
        %v869 = vadd.f32 %v741, %v837
        %v870 = vadd.f32 %v742, %v838
        %v871 = vadd.f32 %v743, %v839
        %v872 = vadd.f32 %v744, %v840
        %v873 = vadd.f32 %v745, %v841
        %v874 = vadd.f32 %v746, %v842
        %v875 = vadd.f32 %v747, %v843
        %v876 = vadd.f32 %v748, %v844
        %v877 = vadd.f32 %v749, %v845
        %v878 = vadd.f32 %v750, %v846
        %v879 = vadd.f32 %v751, %v847
        %v880 = vadd.f32 %v752, %v848
        %v881 = vadd.f32 %v753, %v849
        %v882 = vadd.f32 %v754, %v850
        %v883 = vadd.f32 %v755, %v851
        %v884 = vadd.f32 %v756, %v852
        %v885 = vadd.f32 %v757, %v853
        %v886 = vadd.f32 %v758, %v854
        %v887 = vadd.f32 %v759, %v855
        %v888 = vadd.f32 %v760, %v856
        %v889 = vadd.f32 %v761, %v857
        %922 = vrot.lane.b32.xlu0 %v858, 32
        %v923 = vpop.permute.xlu0 %922
        %924 = vrot.lane.b32.xlu0 %v859, 32
        %v925 = vpop.permute.xlu0 %924
        %926 = vrot.lane.b32.xlu0 %v860, 32
        %v927 = vpop.permute.xlu0 %926
        %928 = vrot.lane.b32.xlu0 %v861, 32
        %v929 = vpop.permute.xlu0 %928
        %930 = vrot.lane.b32.xlu0 %v862, 32
        %v931 = vpop.permute.xlu0 %930
        %932 = vrot.lane.b32.xlu0 %v863, 32
        %v933 = vpop.permute.xlu0 %932
        %934 = vrot.lane.b32.xlu0 %v864, 32
        %v935 = vpop.permute.xlu0 %934
        %936 = vrot.lane.b32.xlu0 %v865, 32
        %v937 = vpop.permute.xlu0 %936
        %938 = vrot.lane.b32.xlu0 %v866, 32
        %v939 = vpop.permute.xlu0 %938
        %940 = vrot.lane.b32.xlu0 %v867, 32
        %v941 = vpop.permute.xlu0 %940
        %942 = vrot.lane.b32.xlu0 %v868, 32
        %v943 = vpop.permute.xlu0 %942
        %944 = vrot.lane.b32.xlu0 %v869, 32
        %v945 = vpop.permute.xlu0 %944
        %946 = vrot.lane.b32.xlu0 %v870, 32
        %v947 = vpop.permute.xlu0 %946
        %948 = vrot.lane.b32.xlu0 %v871, 32
        %v949 = vpop.permute.xlu0 %948
        %950 = vrot.lane.b32.xlu0 %v872, 32
        %v951 = vpop.permute.xlu0 %950
        %952 = vrot.lane.b32.xlu0 %v873, 32
        %v953 = vpop.permute.xlu0 %952
        %954 = vrot.lane.b32.xlu0 %v874, 32
        %v955 = vpop.permute.xlu0 %954
        %956 = vrot.lane.b32.xlu0 %v875, 32
        %v957 = vpop.permute.xlu0 %956
        %958 = vrot.lane.b32.xlu0 %v876, 32
        %v959 = vpop.permute.xlu0 %958
        %960 = vrot.lane.b32.xlu0 %v877, 32
        %v961 = vpop.permute.xlu0 %960
        %962 = vrot.lane.b32.xlu0 %v878, 32
        %v963 = vpop.permute.xlu0 %962
        %964 = vrot.lane.b32.xlu0 %v879, 32
        %v965 = vpop.permute.xlu0 %964
        %966 = vrot.lane.b32.xlu0 %v880, 32
        %v967 = vpop.permute.xlu0 %966
        %968 = vrot.lane.b32.xlu0 %v881, 32
        %v969 = vpop.permute.xlu0 %968
        %970 = vrot.lane.b32.xlu0 %v882, 32
        %v971 = vpop.permute.xlu0 %970
        %972 = vrot.lane.b32.xlu0 %v883, 32
        %v973 = vpop.permute.xlu0 %972
        %974 = vrot.lane.b32.xlu0 %v884, 32
        %v975 = vpop.permute.xlu0 %974
        %976 = vrot.lane.b32.xlu0 %v885, 32
        %v977 = vpop.permute.xlu0 %976
        %978 = vrot.lane.b32.xlu0 %v886, 32
        %v979 = vpop.permute.xlu0 %978
        %980 = vrot.lane.b32.xlu0 %v887, 32
        %v981 = vpop.permute.xlu0 %980
        %982 = vrot.lane.b32.xlu0 %v888, 32
        %v983 = vpop.permute.xlu0 %982
        %984 = vrot.lane.b32.xlu0 %v889, 32
        %v985 = vpop.permute.xlu0 %984
        %vm1018 = vcmask 261120
        %v1019 = vsel %vm1018, %v794, %v923
        %v1020 = vsel %vm1018, %v795, %v925
        %v1021 = vsel %vm1018, %v796, %v927
        %v1022 = vsel %vm1018, %v797, %v929
        %v1023 = vsel %vm1018, %v798, %v931
        %v1024 = vsel %vm1018, %v799, %v933
        %v1025 = vsel %vm1018, %v800, %v935
        %v1026 = vsel %vm1018, %v801, %v937
        %v1027 = vsel %vm1018, %v802, %v939
        %v1028 = vsel %vm1018, %v803, %v941
        %v1029 = vsel %vm1018, %v804, %v943
        %v1030 = vsel %vm1018, %v805, %v945
        %v1031 = vsel %vm1018, %v806, %v947
        %v1032 = vsel %vm1018, %v807, %v949
        %v1033 = vsel %vm1018, %v808, %v951
        %v1034 = vsel %vm1018, %v809, %v953
        %v1035 = vsel %vm1018, %v810, %v955
        %v1036 = vsel %vm1018, %v811, %v957
        %v1037 = vsel %vm1018, %v812, %v959
        %v1038 = vsel %vm1018, %v813, %v961
        %v1039 = vsel %vm1018, %v814, %v963
        %v1040 = vsel %vm1018, %v815, %v965
        %v1041 = vsel %vm1018, %v816, %v967
        %v1042 = vsel %vm1018, %v817, %v969
        %v1043 = vsel %vm1018, %v818, %v971
        %v1044 = vsel %vm1018, %v819, %v973
        %v1045 = vsel %vm1018, %v820, %v975
        %v1046 = vsel %vm1018, %v821, %v977
        %v1047 = vsel %vm1018, %v822, %v979
        %v1048 = vsel %vm1018, %v823, %v981
        %v1049 = vsel %vm1018, %v824, %v983
        %v1050 = vsel %vm1018, %v825, %v985
        %vm1051 = vcmask 523264
        %1052 = vst.msk [vmem:[%s139] sm:$0xff] %vm1051, %v1019
        %1053 = vst.msk [vmem:[%s139 + $0x8] sm:$0xff] %vm1051, %v1020
        %1054 = vst.msk [vmem:[%s139 + $0x10] sm:$0xff] %vm1051, %v1021
        %1055 = vst.msk [vmem:[%s139 + $0x18] sm:$0xff] %vm1051, %v1022
        %1056 = vst.msk [vmem:[%s139 + $0x20] sm:$0xff] %vm1051, %v1023
        %1057 = vst.msk [vmem:[%s139 + $0x28] sm:$0xff] %vm1051, %v1024
        %1058 = vst.msk [vmem:[%s139 + $0x30] sm:$0xff] %vm1051, %v1025
        %1059 = vst.msk [vmem:[%s139 + $0x38] sm:$0xff] %vm1051, %v1026
        %1060 = vst.msk [vmem:[%s139 + $0x40] sm:$0xff] %vm1051, %v1027
        %1061 = vst.msk [vmem:[%s139 + $0x48] sm:$0xff] %vm1051, %v1028
        %1062 = vst.msk [vmem:[%s139 + $0x50] sm:$0xff] %vm1051, %v1029
        %1063 = vst.msk [vmem:[%s139 + $0x58] sm:$0xff] %vm1051, %v1030
        %1064 = vst.msk [vmem:[%s139 + $0x60] sm:$0xff] %vm1051, %v1031
        %1065 = vst.msk [vmem:[%s139 + $0x68] sm:$0xff] %vm1051, %v1032
        %1066 = vst.msk [vmem:[%s139 + $0x70] sm:$0xff] %vm1051, %v1033
        %1067 = vst.msk [vmem:[%s139 + $0x78] sm:$0xff] %vm1051, %v1034
        %1068 = vst.msk [vmem:[%s139 + $0x80] sm:$0xff] %vm1051, %v1035
        %1069 = vst.msk [vmem:[%s139 + $0x88] sm:$0xff] %vm1051, %v1036
        %1070 = vst.msk [vmem:[%s139 + $0x90] sm:$0xff] %vm1051, %v1037
        %1071 = vst.msk [vmem:[%s139 + $0x98] sm:$0xff] %vm1051, %v1038
        %1072 = vst.msk [vmem:[%s139 + $0xa0] sm:$0xff] %vm1051, %v1039
        %1073 = vst.msk [vmem:[%s139 + $0xa8] sm:$0xff] %vm1051, %v1040
        %1074 = vst.msk [vmem:[%s139 + $0xb0] sm:$0xff] %vm1051, %v1041
        %1075 = vst.msk [vmem:[%s139 + $0xb8] sm:$0xff] %vm1051, %v1042
        %1076 = vst.msk [vmem:[%s139 + $0xc0] sm:$0xff] %vm1051, %v1043
        %1077 = vst.msk [vmem:[%s139 + $0xc8] sm:$0xff] %vm1051, %v1044
        %1078 = vst.msk [vmem:[%s139 + $0xd0] sm:$0xff] %vm1051, %v1045
        %1079 = vst.msk [vmem:[%s139 + $0xd8] sm:$0xff] %vm1051, %v1046
        %1080 = vst.msk [vmem:[%s139 + $0xe0] sm:$0xff] %vm1051, %v1047
        %1081 = vst.msk [vmem:[%s139 + $0xe8] sm:$0xff] %vm1051, %v1048
        %1082 = vst.msk [vmem:[%s139 + $0xf0] sm:$0xff] %vm1051, %v1049
        %1083 = vst.msk [vmem:[%s139 + $0xf8] sm:$0xff] %vm1051, %v1050
        %s1084 = sand.u32 %s71, 1
        %s1085 = scalar_lea.sflag [#allocation3], %s1084
        %s1086 = sand.u32 %s71, 1
        %s1087 = smul.addr %s1086, 256
        %s1088 = scalar_lea.vmem [#allocation2], %s1087
        // Predicated region
        $region29: #{tpu_custom_call.1} parent=27 // pred_check
          %p1089 = pneg %p81
        $region30: #{tpu_custom_call.1} parent=27 // pred_check_branch
          %1091 = sbr.rel (%p1089) target = $region32
        $region31: #{tpu_custom_call.1} parent=27 // pred_region
          %s1092 = smul.u32 16, %s16
          %s1094 = ssub.s32 4096, 4096
          %1095 = vsyncadd %s1085, %s1094
          %s1096 = smul.addr %s1092, 2
          %s1097 = smul.addr %s1096, 128
          %s1098 = scalar_lea.hbm %s2, %s1097
          %s1099 = sshll.u32 %s1088, 4
          %s1100 = int_to_ptr.vmem [resolvable:$true] %s1099
          %1105 = dma.vmem_to_hbm [thread:$0]  %s1100, 4096, %s1098, %s1085, 128, 128, 8
        $region32: #{tpu_custom_call.1} parent=27 // pred_fallthru
          _
      $region28: #{tpu_custom_call.1} parent=5 // pred_fallthru
        _
      %p1106 = scmp.le.s32.totalorder 2, %s11
      // Predicated region
      $region33: #{tpu_custom_call.1} parent=5 // pred_check
        %p1107 = pneg %p1106
      $region34: #{tpu_custom_call.1} parent=5 // pred_check_branch
        %1109 = sbr.rel (%p1107) target = $region36
      $region35: #{tpu_custom_call.1} parent=5 // pred_region
        %s1110 = ssub.s32 %s11, 2
        // Predicated region
        $region37: #{tpu_custom_call.1} parent=35 // pred_check
          %p1111 = pneg %p87
        $region38: #{tpu_custom_call.1} parent=35 // pred_check_branch
          %1113 = sbr.rel (%p1111) target = $region40
        $region39: #{tpu_custom_call.1} parent=35 // pred_region
          %s1114 = sand.u32 %s72, 1
          %s1115 = scalar_lea.sflag [#allocation3], %s1114
          %s1116 = sand.u32 %s72, 1
          %s1117 = smul.addr %s1116, 256
          %s1118 = scalar_lea.vmem [#allocation2], %s1117
          %1119 = dma.done %s1115, 4096
        $region40: #{tpu_custom_call.1} parent=35 // pred_fallthru
          _
      $region36: #{tpu_custom_call.1} parent=5 // pred_fallthru
        _
    $region6: #{tpu_custom_call.1} parent=1 // loop_footer
      %s15 = sadd.s32 1, %s11
    $region7: #{tpu_custom_call.1} parent=1 // loop_footer_branch
      %10 = sbr.rel target = $region3
    $region8: #{tpu_custom_call.1} parent=1 // loop_exit
      _
    %1120 = vsyncpa [#allocation3], 1
    %s1121 = scalar_lea.sflag [#allocation3], 1
    %1122 = vsyncpa %s1121, 1

// kernel: tpu_custom_call.1
$region0: #{tpu_custom_call.1}
  #allocation0 [shape = 'u32[]', space=smem, size = 0x4, offset = 0x4, fixed_abs, tag = 'smem constant byte address 0x4 - core index']
  #allocation1 [shape = 'u32[144,128]{1,0:T(1,128)}', space=vmem, size = 0x12000, scoped, tag = 'internal scratch']
  %s0 = inlined_call_operand.vmem [shape: f32[32,16,16], index: 0, kind: input, shape index: {}]
  %s1 = inlined_call_operand.vmem [shape: f32[16,32], index: 1, kind: input, shape index: {}]
  %s2 = inlined_call_operand.hbm [shape: f32[32,16,64], index: 2, kind: output, shape index: {}]
  %s3 = sld [smem:[#allocation0]]
  $region41: #{tpu_custom_call.1} parent=0
    _
  %s5 = ssub.s32 1, %s3
  %s6 = scalar_select 0, %s5, %s3
  $region1: #{tpu_custom_call.1} parent=0
    #allocation2 [shape = 'u8[262144]{0}', space=vmem, size = 0x40000, scoped, tag = 'output window, operand 0']
    #allocation3 [shape = 's32[2]{0}', space=sflag, size = 0x8, scoped, tag = 'scoped memory for tpu_custom_call.1']
    %7 = vsyncpa [#allocation3], 0
    %s8 = scalar_lea.sflag [#allocation3], 1
    %9 = vsyncpa %s8, 0
    loop: start=0, step=1, limit=4
    $region2: #{tpu_custom_call.1} parent=1 // loop_pre_header
      _
    $region3: #{tpu_custom_call.1} parent=1 // loop_header
      %s11 = sphi 0, %s15
      %p12 = scmp.ge.s32.totalorder %s11, 4
      %s21 = sphi 0, %s23
      %s24 = sphi 0, %s21
      %s25 = sphi 0, %s24
      %s41 = sphi 0, %s25
      %s45 = sphi 0, %s45
      %s47 = sphi 0, %s45
      %s48 = sphi 0, %s47
      %s62 = sphi 0, %s48
      %s68 = sphi 0, %s70
      %s71 = sphi 0, %s68
      %s72 = sphi 0, %s71
      %s88 = sphi 0, %s72
    $region4: #{tpu_custom_call.1} parent=1 // loop_header_branch
      %14 = sbr.rel (%p12) target = $region8
    $region5: #{tpu_custom_call.1} parent=1 // loop_body
      %s16 = ssub.s32 %s11, 1
      %s17 = ssub.s32 %s11, 2
      %s18 = sadd.s32 %s11, 1
      %s19 = ssub.s32 %s11, %s18
      %p20 = scmp.eq.s32.totalorder %s19, 0
      %s22 = sadd.s32 %s21, 1
      %s23 = scalar_select %p20, %s21, %s22
      %p26 = pneg %p20
      %p27 = scmp.eq.s32.totalorder %s11, 1
      %p28 = por %p26, %p27
      %p29 = scmp.ne.s32.totalorder %s21, %s24
      %p30 = scmp.eq.s32.totalorder %s11, 0
      %p31 = por %p29, %p30
      %p32 = scmp.ne.s32.totalorder %s21, %s24
      %p33 = scmp.eq.s32.totalorder %s16, 1
      %p34 = por %p32, %p33
      %p35 = scmp.ne.s32.totalorder %s24, %s25
      %p36 = scmp.eq.s32.totalorder %s16, 0
      %p37 = por %p35, %p36
      %p38 = scmp.ne.s32.totalorder %s24, %s25
      %p39 = scmp.eq.s32.totalorder %s17, 1
      %p40 = por %p38, %p39
      %p42 = scmp.ne.s32.totalorder %s25, %s41
      %p43 = scmp.eq.s32.totalorder %s17, 0
      %p44 = por %p42, %p43
      %s46 = sadd.s32 %s45, 1
      %p49 = scmp.eq.s32.totalorder %s11, 1
      %p50 = scmp.ne.s32.totalorder %s45, %s47
      %p51 = scmp.eq.s32.totalorder %s11, 0
      %p52 = por %p50, %p51
      %p53 = scmp.ne.s32.totalorder %s45, %s47
      %p54 = scmp.eq.s32.totalorder %s16, 1
      %p55 = por %p53, %p54
      %p56 = scmp.ne.s32.totalorder %s47, %s48
      %p57 = scmp.eq.s32.totalorder %s16, 0
      %p58 = por %p56, %p57
      %p59 = scmp.ne.s32.totalorder %s47, %s48
      %p60 = scmp.eq.s32.totalorder %s17, 1
      %p61 = por %p59, %p60
      %p63 = scmp.ne.s32.totalorder %s48, %s62
      %p64 = scmp.eq.s32.totalorder %s17, 0
      %p65 = por %p63, %p64
      %s66 = ssub.s32 %s11, %s18
      %p67 = scmp.eq.s32.totalorder %s66, 0
      %s69 = sadd.s32 %s68, 1
      %s70 = scalar_select %p67, %s68, %s69
      %p73 = pneg %p67
      %p74 = scmp.eq.s32.totalorder %s11, 1
      %p75 = por %p73, %p74
      %p76 = scmp.ne.s32.totalorder %s68, %s71
      %p77 = scmp.eq.s32.totalorder %s11, 0
      %p78 = por %p76, %p77
      %p79 = scmp.ne.s32.totalorder %s68, %s71
      %p80 = scmp.eq.s32.totalorder %s16, 1
      %p81 = por %p79, %p80
      %p82 = scmp.ne.s32.totalorder %s71, %s72
      %p83 = scmp.eq.s32.totalorder %s16, 0
      %p84 = por %p82, %p83
      %p85 = scmp.ne.s32.totalorder %s71, %s72
      %p86 = scmp.eq.s32.totalorder %s17, 1
      %p87 = por %p85, %p86
      %p89 = scmp.ne.s32.totalorder %s72, %s88
      %p90 = scmp.eq.s32.totalorder %s17, 0
      %p91 = por %p89, %p90
      %p92 = scmp.le.s32.totalorder 1, %s11
      %p93 = scmp.lt.s32.totalorder %s11, 3
      %p94 = pnand %p92, %p93
      %p95 = pneg %p94
      // Predicated region
      $region9: #{tpu_custom_call.1} parent=5 // pred_check
        _
      $region10: #{tpu_custom_call.1} parent=5 // pred_check_branch
        %97 = sbr.rel (%p94) target = $region12
      $region11: #{tpu_custom_call.1} parent=5 // pred_region
        %s98 = ssub.s32 %s11, 1
        // Predicated region
        $region13: #{tpu_custom_call.1} parent=11 // pred_check
          %p99 = pneg %p58
        $region14: #{tpu_custom_call.1} parent=11 // pred_check_branch
          %101 = sbr.rel (%p99) target = $region16
        $region15: #{tpu_custom_call.1} parent=11 // pred_region
          _
        $region16: #{tpu_custom_call.1} parent=11 // pred_fallthru
          _
      $region12: #{tpu_custom_call.1} parent=5 // pred_fallthru
        _
      %p102 = scmp.lt.s32.totalorder %s11, 2
      // Predicated region
      $region17: #{tpu_custom_call.1} parent=5 // pred_check
        %p103 = pneg %p102
      $region18: #{tpu_custom_call.1} parent=5 // pred_check_branch
        %105 = sbr.rel (%p103) target = $region20
      $region19: #{tpu_custom_call.1} parent=5 // pred_region
        // Predicated region
        $region21: #{tpu_custom_call.1} parent=19 // pred_check
          %p106 = pneg %p31
        $region22: #{tpu_custom_call.1} parent=19 // pred_check_branch
          %108 = sbr.rel (%p106) target = $region24
        $region23: #{tpu_custom_call.1} parent=19 // pred_region
          %s109 = smul.u32 16, %s11
          %p110 = scmp.lt.s32.totalorder %s109, 31
          %s111 = scalar_select %p110, %s109, 31
          %s112 = smul.addr %s111, 2
          %s113 = smul.addr %s112, 8
          %s114 = scalar_lea.vmem %s0, %s113
          %s115 = smul.u32 16, %s11
        $region24: #{tpu_custom_call.1} parent=19 // pred_fallthru
          _
      $region20: #{tpu_custom_call.1} parent=5 // pred_fallthru
        _
      %p116 = scmp.le.s32.totalorder 1, %s11
      %p117 = scmp.lt.s32.totalorder %s11, 3
      %p118 = pnand %p116, %p117
      %p119 = pneg %p118
      // Predicated region
      $region25: #{tpu_custom_call.1} parent=5 // pred_check
        _
      $region26: #{tpu_custom_call.1} parent=5 // pred_check_branch
        %121 = sbr.rel (%p118) target = $region28
      $region27: #{tpu_custom_call.1} parent=5 // pred_region
        %s122 = ssub.s32 %s11, 1
        %s123 = smul.u32 16, %s16
        %p124 = scmp.lt.s32.totalorder %s123, 31
        %s125 = scalar_select %p124, %s123, 31
        %s126 = smul.addr %s125, 2
        %s127 = smul.addr %s126, 8
        %s128 = scalar_lea.vmem %s0, %s127
        %p129 = pneg %p37
        %p130 = pneg %p34
        %p131 = pneg %p58
        %p132 = pneg %p55
        %p133 = pneg %p84
        %p134 = pneg %p81
        %s135 = sand.u32 %s71, 1
        %s136 = scalar_lea.sflag [#allocation3], %s135
        %s137 = sand.u32 %s71, 1
        %s138 = smul.addr %s137, 256
        %s139 = scalar_lea.vmem [#allocation2], %s138
        %s140 = smul.u32 16, %s16
        %p141 = scmp.lt.s32.totalorder %s140, 31
        %s142 = scalar_select %p141, %s140, 31
        %s143 = smul.addr %s142, 2
        %s144 = smul.addr %s143, 8
        %s145 = scalar_lea.vmem %s0, %s144
        %s146 = smul.u32 16, %s16
        %s147 = smul.u32 16, %s16
        %v148 = vld [vmem:[%s145] sm:$0xff]
        %v149 = vld [vmem:[%s145 + $0x8] sm:$0xff]
        %v150 = vld [vmem:[%s145 + $0x10] sm:$0xff]
        %v151 = vld [vmem:[%s145 + $0x18] sm:$0xff]
        %v152 = vld [vmem:[%s145 + $0x20] sm:$0xff]
        %v153 = vld [vmem:[%s145 + $0x28] sm:$0xff]
        %v154 = vld [vmem:[%s145 + $0x30] sm:$0xff]
        %v155 = vld [vmem:[%s145 + $0x38] sm:$0xff]
        %v156 = vld [vmem:[%s145 + $0x40] sm:$0xff]
        %v157 = vld [vmem:[%s145 + $0x48] sm:$0xff]
        %v158 = vld [vmem:[%s145 + $0x50] sm:$0xff]
        %v159 = vld [vmem:[%s145 + $0x58] sm:$0xff]
        %v160 = vld [vmem:[%s145 + $0x60] sm:$0xff]
        %v161 = vld [vmem:[%s145 + $0x68] sm:$0xff]
        %v162 = vld [vmem:[%s145 + $0x70] sm:$0xff]
        %v163 = vld [vmem:[%s145 + $0x78] sm:$0xff]
        %v164 = vld [vmem:[%s145 + $0x80] sm:$0xff]
        %v165 = vld [vmem:[%s145 + $0x88] sm:$0xff]
        %v166 = vld [vmem:[%s145 + $0x90] sm:$0xff]
        %v167 = vld [vmem:[%s145 + $0x98] sm:$0xff]
        %v168 = vld [vmem:[%s145 + $0xa0] sm:$0xff]
        %v169 = vld [vmem:[%s145 + $0xa8] sm:$0xff]
        %v170 = vld [vmem:[%s145 + $0xb0] sm:$0xff]
        %v171 = vld [vmem:[%s145 + $0xb8] sm:$0xff]
        %v172 = vld [vmem:[%s145 + $0xc0] sm:$0xff]
        %v173 = vld [vmem:[%s145 + $0xc8] sm:$0xff]
        %v174 = vld [vmem:[%s145 + $0xd0] sm:$0xff]
        %v175 = vld [vmem:[%s145 + $0xd8] sm:$0xff]
        %v176 = vld [vmem:[%s145 + $0xe0] sm:$0xff]
        %v177 = vld [vmem:[%s145 + $0xe8] sm:$0xff]
        %v178 = vld [vmem:[%s145 + $0xf0] sm:$0xff]
        %v179 = vld [vmem:[%s145 + $0xf8] sm:$0xff]
        %v180 = vld [vmem:[%s1] sm:$0xff]
        %v181 = vld [vmem:[%s1 + $0x8] sm:$0xff]
        %vm182 = vcmask 130048
        %v184 = vsel %vm182, %v148, 0
        %v187 = vsel %vm182, %v149, 0
        %v190 = vsel %vm182, %v150, 0
        %v193 = vsel %vm182, %v151, 0
        %v196 = vsel %vm182, %v152, 0
        %v199 = vsel %vm182, %v153, 0
        %v202 = vsel %vm182, %v154, 0
        %v205 = vsel %vm182, %v155, 0
        %v208 = vsel %vm182, %v156, 0
        %v211 = vsel %vm182, %v157, 0
        %v214 = vsel %vm182, %v158, 0
        %v217 = vsel %vm182, %v159, 0
        %v220 = vsel %vm182, %v160, 0
        %v223 = vsel %vm182, %v161, 0
        %v226 = vsel %vm182, %v162, 0
        %v229 = vsel %vm182, %v163, 0
        %v232 = vsel %vm182, %v164, 0
        %v235 = vsel %vm182, %v165, 0
        %v238 = vsel %vm182, %v166, 0
        %v241 = vsel %vm182, %v167, 0
        %v244 = vsel %vm182, %v168, 0
        %v247 = vsel %vm182, %v169, 0
        %v250 = vsel %vm182, %v170, 0
        %v253 = vsel %vm182, %v171, 0
        %v256 = vsel %vm182, %v172, 0
        %v259 = vsel %vm182, %v173, 0
        %v262 = vsel %vm182, %v174, 0
        %v265 = vsel %vm182, %v175, 0
        %v268 = vsel %vm182, %v176, 0
        %v271 = vsel %vm182, %v177, 0
        %v274 = vsel %vm182, %v178, 0
        %v277 = vsel %vm182, %v179, 0
        %279 = vmatprep.subr.mxu0 0.0
        %280 = vmatpush1.msra.mxu0 0.0
        %281 = vmatprep.subr.mxu0 0.0
        %282 = vmatpush1.msra.mxu0 0.0
        %283 = vmatprep.subr.mxu0 0.0
        %284 = vmatpush1.msra.mxu0 0.0
        %285 = vmatprep.subr.mxu0 0.0
        %286 = vmatpush1.msra.mxu0 0.0
        %287 = vmatprep.subr.mxu0 0.0
        %288 = vmatpush1.msra.mxu0 0.0
        %289 = vmatprep.subr.mxu0 0.0
        %290 = vmatpush1.msra.mxu0 0.0
        %291 = vmatprep.subr.mxu0 0.0
        %292 = vmatpush1.msra.mxu0 0.0
        %293 = vmatprep.subr.mxu0 0.0
        %294 = vmatpush1.msra.mxu0 0.0
        %295 = vmatprep.subr.mxu0 0.0
        %296 = vmatpush1.msra.mxu0 0.0
        %297 = vmatprep.subr.mxu0 0.0
        %298 = vmatpush1.msra.mxu0 0.0
        %299 = vmatprep.subr.mxu0 0.0
        %300 = vmatpush1.msra.mxu0 0.0
        %301 = vmatprep.subr.mxu0 0.0
        %302 = vmatpush1.msra.mxu0 0.0
        %303 = vmatprep.subr.mxu0 0.0
        %304 = vmatpush1.msra.mxu0 0.0
        %305 = vmatprep.subr.mxu0 0.0
        %306 = vmatpush1.msra.mxu0 0.0
        %307 = vmatprep.subr.mxu0 0.0
        %308 = vmatpush1.msra.mxu0 %v181
        %309 = vmatprep.subr.mxu0 0.0
        %310 = vmatpush1.msra.mxu0 %v180
        %311 = vmatprep.subr.mxu0 0.0
        %312 = vmatpush2.msra.mxu0 0.0
        %313 = vmatprep.subr.mxu0 0.0
        %314 = vmatpush2.msra.mxu0 0.0
        %315 = vmatprep.subr.mxu0 0.0
        %316 = vmatpush2.msra.mxu0 0.0
        %317 = vmatprep.subr.mxu0 0.0
        %318 = vmatpush2.msra.mxu0 0.0
        %319 = vmatprep.subr.mxu0 0.0
        %320 = vmatpush2.msra.mxu0 0.0
        %321 = vmatprep.subr.mxu0 0.0
        %322 = vmatpush2.msra.mxu0 0.0
        %323 = vmatprep.subr.mxu0 0.0
        %324 = vmatpush2.msra.mxu0 0.0
        %325 = vmatprep.subr.mxu0 0.0
        %326 = vmatpush2.msra.mxu0 0.0
        %327 = vmatprep.subr.mxu0 0.0
        %328 = vmatpush2.msra.mxu0 0.0
        %329 = vmatprep.subr.mxu0 0.0
        %330 = vmatpush2.msra.mxu0 0.0
        %331 = vmatprep.subr.mxu0 0.0
        %332 = vmatpush2.msra.mxu0 0.0
        %333 = vmatprep.subr.mxu0 0.0
        %334 = vmatpush2.msra.mxu0 0.0
        %335 = vmatprep.subr.mxu0 0.0
        %336 = vmatpush2.msra.mxu0 0.0
        %337 = vmatprep.subr.mxu0 0.0
        %338 = vmatpush2.msra.mxu0 0.0
        %339 = vmatprep.subr.mxu0 0.0
        %340 = vmatpush2.msra.mxu0 0.0
        %341 = vmatprep.subr.mxu0 0.0
        %342 = vmatpush2.msra.mxu0 0.0
        %343 = vmatprep.mubr.f32.mxu0 0.0
        %344 = vmatmul.mubr.f32.gmra.mxu0 %v184
        %v345 = vpop.f32.mrf.mxu0
        %v346 = vadd.f32 0.0, %v345
        %v347 = vpop.f32.mrf.mxu0
        %348 = vmatprep.mubr.f32.mxu0 0.0
        %349 = vmatmul.mubr.f32.gmra.mxu0 %v187
        %v350 = vpop.f32.mrf.mxu0
        %v351 = vadd.f32 0.0, %v350
        %v352 = vpop.f32.mrf.mxu0
        %353 = vmatprep.mubr.f32.mxu0 0.0
        %354 = vmatmul.mubr.f32.gmra.mxu0 %v190
        %v355 = vpop.f32.mrf.mxu0
        %v356 = vadd.f32 0.0, %v355
        %v357 = vpop.f32.mrf.mxu0
        %358 = vmatprep.mubr.f32.mxu0 0.0
        %359 = vmatmul.mubr.f32.gmra.mxu0 %v193
        %v360 = vpop.f32.mrf.mxu0
        %v361 = vadd.f32 0.0, %v360
        %v362 = vpop.f32.mrf.mxu0
        %363 = vmatprep.mubr.f32.mxu0 0.0
        %364 = vmatmul.mubr.f32.gmra.mxu0 %v196
        %v365 = vpop.f32.mrf.mxu0
        %v366 = vadd.f32 0.0, %v365
        %v367 = vpop.f32.mrf.mxu0
        %368 = vmatprep.mubr.f32.mxu0 0.0
        %369 = vmatmul.mubr.f32.gmra.mxu0 %v199
        %v370 = vpop.f32.mrf.mxu0
        %v371 = vadd.f32 0.0, %v370
        %v372 = vpop.f32.mrf.mxu0
        %373 = vmatprep.mubr.f32.mxu0 0.0
        %374 = vmatmul.mubr.f32.gmra.mxu0 %v202
        %v375 = vpop.f32.mrf.mxu0
        %v376 = vadd.f32 0.0, %v375
        %v377 = vpop.f32.mrf.mxu0
        %378 = vmatprep.mubr.f32.mxu0 0.0
        %379 = vmatmul.mubr.f32.gmra.mxu0 %v205
        %v380 = vpop.f32.mrf.mxu0
        %v381 = vadd.f32 0.0, %v380
        %v382 = vpop.f32.mrf.mxu0
        %383 = vmatprep.mubr.f32.mxu0 0.0
        %384 = vmatmul.mubr.f32.gmra.mxu0 %v208
        %v385 = vpop.f32.mrf.mxu0
        %v386 = vadd.f32 0.0, %v385
        %v387 = vpop.f32.mrf.mxu0
        %388 = vmatprep.mubr.f32.mxu0 0.0
        %389 = vmatmul.mubr.f32.gmra.mxu0 %v211
        %v390 = vpop.f32.mrf.mxu0
        %v391 = vadd.f32 0.0, %v390
        %v392 = vpop.f32.mrf.mxu0
        %393 = vmatprep.mubr.f32.mxu0 0.0
        %394 = vmatmul.mubr.f32.gmra.mxu0 %v214
        %v395 = vpop.f32.mrf.mxu0
        %v396 = vadd.f32 0.0, %v395
        %v397 = vpop.f32.mrf.mxu0
        %398 = vmatprep.mubr.f32.mxu0 0.0
        %399 = vmatmul.mubr.f32.gmra.mxu0 %v217
        %v400 = vpop.f32.mrf.mxu0
        %v401 = vadd.f32 0.0, %v400
        %v402 = vpop.f32.mrf.mxu0
        %403 = vmatprep.mubr.f32.mxu0 0.0
        %404 = vmatmul.mubr.f32.gmra.mxu0 %v220
        %v405 = vpop.f32.mrf.mxu0
        %v406 = vadd.f32 0.0, %v405
        %v407 = vpop.f32.mrf.mxu0
        %408 = vmatprep.mubr.f32.mxu0 0.0
        %409 = vmatmul.mubr.f32.gmra.mxu0 %v223
        %v410 = vpop.f32.mrf.mxu0
        %v411 = vadd.f32 0.0, %v410
        %v412 = vpop.f32.mrf.mxu0
        %413 = vmatprep.mubr.f32.mxu0 0.0
        %414 = vmatmul.mubr.f32.gmra.mxu0 %v226
        %v415 = vpop.f32.mrf.mxu0
        %v416 = vadd.f32 0.0, %v415
        %v417 = vpop.f32.mrf.mxu0
        %418 = vmatprep.mubr.f32.mxu0 0.0
        %419 = vmatmul.mubr.f32.gmra.mxu0 %v229
        %v420 = vpop.f32.mrf.mxu0
        %v421 = vadd.f32 0.0, %v420
        %v422 = vpop.f32.mrf.mxu0
        %423 = vmatprep.mubr.f32.mxu0 0.0
        %424 = vmatmul.mubr.f32.gmra.mxu0 %v232
        %v425 = vpop.f32.mrf.mxu0
        %v426 = vadd.f32 0.0, %v425
        %v427 = vpop.f32.mrf.mxu0
        %428 = vmatprep.mubr.f32.mxu0 0.0
        %429 = vmatmul.mubr.f32.gmra.mxu0 %v235
        %v430 = vpop.f32.mrf.mxu0
        %v431 = vadd.f32 0.0, %v430
        %v432 = vpop.f32.mrf.mxu0
        %433 = vmatprep.mubr.f32.mxu0 0.0
        %434 = vmatmul.mubr.f32.gmra.mxu0 %v238
        %v435 = vpop.f32.mrf.mxu0
        %v436 = vadd.f32 0.0, %v435
        %v437 = vpop.f32.mrf.mxu0
        %438 = vmatprep.mubr.f32.mxu0 0.0
        %439 = vmatmul.mubr.f32.gmra.mxu0 %v241
        %v440 = vpop.f32.mrf.mxu0
        %v441 = vadd.f32 0.0, %v440
        %v442 = vpop.f32.mrf.mxu0
        %443 = vmatprep.mubr.f32.mxu0 0.0
        %444 = vmatmul.mubr.f32.gmra.mxu0 %v244
        %v445 = vpop.f32.mrf.mxu0
        %v446 = vadd.f32 0.0, %v445
        %v447 = vpop.f32.mrf.mxu0
        %448 = vmatprep.mubr.f32.mxu0 0.0
        %449 = vmatmul.mubr.f32.gmra.mxu0 %v247
        %v450 = vpop.f32.mrf.mxu0
        %v451 = vadd.f32 0.0, %v450
        %v452 = vpop.f32.mrf.mxu0
        %453 = vmatprep.mubr.f32.mxu0 0.0
        %454 = vmatmul.mubr.f32.gmra.mxu0 %v250
        %v455 = vpop.f32.mrf.mxu0
        %v456 = vadd.f32 0.0, %v455
        %v457 = vpop.f32.mrf.mxu0
        %458 = vmatprep.mubr.f32.mxu0 0.0
        %459 = vmatmul.mubr.f32.gmra.mxu0 %v253
        %v460 = vpop.f32.mrf.mxu0
        %v461 = vadd.f32 0.0, %v460
        %v462 = vpop.f32.mrf.mxu0
        %463 = vmatprep.mubr.f32.mxu0 0.0
        %464 = vmatmul.mubr.f32.gmra.mxu0 %v256
        %v465 = vpop.f32.mrf.mxu0
        %v466 = vadd.f32 0.0, %v465
        %v467 = vpop.f32.mrf.mxu0
        %468 = vmatprep.mubr.f32.mxu0 0.0
        %469 = vmatmul.mubr.f32.gmra.mxu0 %v259
        %v470 = vpop.f32.mrf.mxu0
        %v471 = vadd.f32 0.0, %v470
        %v472 = vpop.f32.mrf.mxu0
        %473 = vmatprep.mubr.f32.mxu0 0.0
        %474 = vmatmul.mubr.f32.gmra.mxu0 %v262
        %v475 = vpop.f32.mrf.mxu0
        %v476 = vadd.f32 0.0, %v475
        %v477 = vpop.f32.mrf.mxu0
        %478 = vmatprep.mubr.f32.mxu0 0.0
        %479 = vmatmul.mubr.f32.gmra.mxu0 %v265
        %v480 = vpop.f32.mrf.mxu0
        %v481 = vadd.f32 0.0, %v480
        %v482 = vpop.f32.mrf.mxu0
        %483 = vmatprep.mubr.f32.mxu0 0.0
        %484 = vmatmul.mubr.f32.gmra.mxu0 %v268
        %v485 = vpop.f32.mrf.mxu0
        %v486 = vadd.f32 0.0, %v485
        %v487 = vpop.f32.mrf.mxu0
        %488 = vmatprep.mubr.f32.mxu0 0.0
        %489 = vmatmul.mubr.f32.gmra.mxu0 %v271
        %v490 = vpop.f32.mrf.mxu0
        %v491 = vadd.f32 0.0, %v490
        %v492 = vpop.f32.mrf.mxu0
        %493 = vmatprep.mubr.f32.mxu0 0.0
        %494 = vmatmul.mubr.f32.gmra.mxu0 %v274
        %v495 = vpop.f32.mrf.mxu0
        %v496 = vadd.f32 0.0, %v495
        %v497 = vpop.f32.mrf.mxu0
        %498 = vmatprep.mubr.f32.mxu0 0.0
        %499 = vmatmul.mubr.f32.gmra.mxu0 %v277
        %v500 = vpop.f32.mrf.mxu0
        %v501 = vadd.f32 0.0, %v500
        %v502 = vpop.f32.mrf.mxu0
        %503 = vdwg.mxu0
        %vm536 = vcmask 1040384
        %v537 = vrot.slane %v346, 7
        %v538 = vrot.slane %v351, 7
        %v539 = vsel %vm536, %v537, %v538
        %v540 = vrot.slane %v356, 7
        %v541 = vrot.slane %v361, 7
        %v542 = vsel %vm536, %v540, %v541
        %v543 = vrot.slane %v366, 7
        %v544 = vrot.slane %v371, 7
        %v545 = vsel %vm536, %v543, %v544
        %v546 = vrot.slane %v376, 7
        %v547 = vrot.slane %v381, 7
        %v548 = vsel %vm536, %v546, %v547
        %v549 = vrot.slane %v386, 7
        %v550 = vrot.slane %v391, 7
        %v551 = vsel %vm536, %v549, %v550
        %v552 = vrot.slane %v396, 7
        %v553 = vrot.slane %v401, 7
        %v554 = vsel %vm536, %v552, %v553
        %v555 = vrot.slane %v406, 7
        %v556 = vrot.slane %v411, 7
        %v557 = vsel %vm536, %v555, %v556
        %v558 = vrot.slane %v416, 7
        %v559 = vrot.slane %v421, 7
        %v560 = vsel %vm536, %v558, %v559
        %v561 = vrot.slane %v426, 7
        %v562 = vrot.slane %v431, 7
        %v563 = vsel %vm536, %v561, %v562
        %v564 = vrot.slane %v436, 7
        %v565 = vrot.slane %v441, 7
        %v566 = vsel %vm536, %v564, %v565
        %v567 = vrot.slane %v446, 7
        %v568 = vrot.slane %v451, 7
        %v569 = vsel %vm536, %v567, %v568
        %v570 = vrot.slane %v456, 7
        %v571 = vrot.slane %v461, 7
        %v572 = vsel %vm536, %v570, %v571
        %v573 = vrot.slane %v466, 7
        %v574 = vrot.slane %v471, 7
        %v575 = vsel %vm536, %v573, %v574
        %v576 = vrot.slane %v476, 7
        %v577 = vrot.slane %v481, 7
        %v578 = vsel %vm536, %v576, %v577
        %v579 = vrot.slane %v486, 7
        %v580 = vrot.slane %v491, 7
        %v581 = vsel %vm536, %v579, %v580
        %v582 = vrot.slane %v496, 7
        %v583 = vrot.slane %v501, 7
        %v584 = vsel %vm536, %v582, %v583
        %v617 = vsel %vm536, 0.0, %v537
        %v618 = vsel %vm536, 0.0, %v540
        %v619 = vsel %vm536, 0.0, %v543
        %v620 = vsel %vm536, 0.0, %v546
        %v621 = vsel %vm536, 0.0, %v549
        %v622 = vsel %vm536, 0.0, %v552
        %v623 = vsel %vm536, 0.0, %v555
        %v624 = vsel %vm536, 0.0, %v558
        %v625 = vsel %vm536, 0.0, %v561
        %v626 = vsel %vm536, 0.0, %v564
        %v627 = vsel %vm536, 0.0, %v567
        %v628 = vsel %vm536, 0.0, %v570
        %v629 = vsel %vm536, 0.0, %v573
        %v630 = vsel %vm536, 0.0, %v576
        %v631 = vsel %vm536, 0.0, %v579
        %v632 = vsel %vm536, 0.0, %v582
        %vm633 = vcmask 1046528
        %v634 = vrot.slane %v346, 1
        %v635 = vrot.slane %v351, 1
        %v636 = vsel %vm633, %v634, %v635
        %v637 = vrot.slane %v356, 1
        %v638 = vrot.slane %v361, 1
        %v639 = vsel %vm633, %v637, %v638
        %v640 = vrot.slane %v366, 1
        %v641 = vrot.slane %v371, 1
        %v642 = vsel %vm633, %v640, %v641
        %v643 = vrot.slane %v376, 1
        %v644 = vrot.slane %v381, 1
        %v645 = vsel %vm633, %v643, %v644
        %v646 = vrot.slane %v386, 1
        %v647 = vrot.slane %v391, 1
        %v648 = vsel %vm633, %v646, %v647
        %v649 = vrot.slane %v396, 1
        %v650 = vrot.slane %v401, 1
        %v651 = vsel %vm633, %v649, %v650
        %v652 = vrot.slane %v406, 1
        %v653 = vrot.slane %v411, 1
        %v654 = vsel %vm633, %v652, %v653
        %v655 = vrot.slane %v416, 1
        %v656 = vrot.slane %v421, 1
        %v657 = vsel %vm633, %v655, %v656
        %v658 = vrot.slane %v426, 1
        %v659 = vrot.slane %v431, 1
        %v660 = vsel %vm633, %v658, %v659
        %v661 = vrot.slane %v436, 1
        %v662 = vrot.slane %v441, 1
        %v663 = vsel %vm633, %v661, %v662
        %v664 = vrot.slane %v446, 1
        %v665 = vrot.slane %v451, 1
        %v666 = vsel %vm633, %v664, %v665
        %v667 = vrot.slane %v456, 1
        %v668 = vrot.slane %v461, 1
        %v669 = vsel %vm633, %v667, %v668
        %v670 = vrot.slane %v466, 1
        %v671 = vrot.slane %v471, 1
        %v672 = vsel %vm633, %v670, %v671
        %v673 = vrot.slane %v476, 1
        %v674 = vrot.slane %v481, 1
        %v675 = vsel %vm633, %v673, %v674
        %v676 = vrot.slane %v486, 1
        %v677 = vrot.slane %v491, 1
        %v678 = vsel %vm633, %v676, %v677
        %v679 = vrot.slane %v496, 1
        %v680 = vrot.slane %v501, 1
        %v681 = vsel %vm633, %v679, %v680
        %v714 = vsel %vm633, %v635, 0.0
        %v715 = vsel %vm633, %v638, 0.0
        %v716 = vsel %vm633, %v641, 0.0
        %v717 = vsel %vm633, %v644, 0.0
        %v718 = vsel %vm633, %v647, 0.0
        %v719 = vsel %vm633, %v650, 0.0
        %v720 = vsel %vm633, %v653, 0.0
        %v721 = vsel %vm633, %v656, 0.0
        %v722 = vsel %vm633, %v659, 0.0
        %v723 = vsel %vm633, %v662, 0.0
        %v724 = vsel %vm633, %v665, 0.0
        %v725 = vsel %vm633, %v668, 0.0
        %v726 = vsel %vm633, %v671, 0.0
        %v727 = vsel %vm633, %v674, 0.0
        %v728 = vsel %vm633, %v677, 0.0
        %v729 = vsel %vm633, %v680, 0.0
        %v730 = vmul.f32 %v346, 0.75
        %v731 = vmul.f32 %v351, 0.75
        %v732 = vmul.f32 %v356, 0.75
        %v733 = vmul.f32 %v361, 0.75
        %v734 = vmul.f32 %v366, 0.75
        %v735 = vmul.f32 %v371, 0.75
        %v736 = vmul.f32 %v376, 0.75
        %v737 = vmul.f32 %v381, 0.75
        %v738 = vmul.f32 %v386, 0.75
        %v739 = vmul.f32 %v391, 0.75
        %v740 = vmul.f32 %v396, 0.75
        %v741 = vmul.f32 %v401, 0.75
        %v742 = vmul.f32 %v406, 0.75
        %v743 = vmul.f32 %v411, 0.75
        %v744 = vmul.f32 %v416, 0.75
        %v745 = vmul.f32 %v421, 0.75
        %v746 = vmul.f32 %v426, 0.75
        %v747 = vmul.f32 %v431, 0.75
        %v748 = vmul.f32 %v436, 0.75
        %v749 = vmul.f32 %v441, 0.75
        %v750 = vmul.f32 %v446, 0.75
        %v751 = vmul.f32 %v451, 0.75
        %v752 = vmul.f32 %v456, 0.75
        %v753 = vmul.f32 %v461, 0.75
        %v754 = vmul.f32 %v466, 0.75
        %v755 = vmul.f32 %v471, 0.75
        %v756 = vmul.f32 %v476, 0.75
        %v757 = vmul.f32 %v481, 0.75
        %v758 = vmul.f32 %v486, 0.75
        %v759 = vmul.f32 %v491, 0.75
        %v760 = vmul.f32 %v496, 0.75
        %v761 = vmul.f32 %v501, 0.75
        %v762 = vmul.f32 %v617, 0.25
        %v763 = vmul.f32 %v539, 0.25
        %v764 = vmul.f32 %v618, 0.25
        %v765 = vmul.f32 %v542, 0.25
        %v766 = vmul.f32 %v619, 0.25
        %v767 = vmul.f32 %v545, 0.25
        %v768 = vmul.f32 %v620, 0.25
        %v769 = vmul.f32 %v548, 0.25
        %v770 = vmul.f32 %v621, 0.25
        %v771 = vmul.f32 %v551, 0.25
        %v772 = vmul.f32 %v622, 0.25
        %v773 = vmul.f32 %v554, 0.25
        %v774 = vmul.f32 %v623, 0.25
        %v775 = vmul.f32 %v557, 0.25
        %v776 = vmul.f32 %v624, 0.25
        %v777 = vmul.f32 %v560, 0.25
        %v778 = vmul.f32 %v625, 0.25
        %v779 = vmul.f32 %v563, 0.25
        %v780 = vmul.f32 %v626, 0.25
        %v781 = vmul.f32 %v566, 0.25
        %v782 = vmul.f32 %v627, 0.25
        %v783 = vmul.f32 %v569, 0.25
        %v784 = vmul.f32 %v628, 0.25
        %v785 = vmul.f32 %v572, 0.25
        %v786 = vmul.f32 %v629, 0.25
        %v787 = vmul.f32 %v575, 0.25
        %v788 = vmul.f32 %v630, 0.25
        %v789 = vmul.f32 %v578, 0.25
        %v790 = vmul.f32 %v631, 0.25
        %v791 = vmul.f32 %v581, 0.25
        %v792 = vmul.f32 %v632, 0.25
        %v793 = vmul.f32 %v584, 0.25
        %v794 = vadd.f32 %v730, %v762
        %v795 = vadd.f32 %v731, %v763
        %v796 = vadd.f32 %v732, %v764
        %v797 = vadd.f32 %v733, %v765
        %v798 = vadd.f32 %v734, %v766
        %v799 = vadd.f32 %v735, %v767
        %v800 = vadd.f32 %v736, %v768
        %v801 = vadd.f32 %v737, %v769
        %v802 = vadd.f32 %v738, %v770
        %v803 = vadd.f32 %v739, %v771
        %v804 = vadd.f32 %v740, %v772
        %v805 = vadd.f32 %v741, %v773
        %v806 = vadd.f32 %v742, %v774
        %v807 = vadd.f32 %v743, %v775
        %v808 = vadd.f32 %v744, %v776
        %v809 = vadd.f32 %v745, %v777
        %v810 = vadd.f32 %v746, %v778
        %v811 = vadd.f32 %v747, %v779
        %v812 = vadd.f32 %v748, %v780
        %v813 = vadd.f32 %v749, %v781
        %v814 = vadd.f32 %v750, %v782
        %v815 = vadd.f32 %v751, %v783
        %v816 = vadd.f32 %v752, %v784
        %v817 = vadd.f32 %v753, %v785
        %v818 = vadd.f32 %v754, %v786
        %v819 = vadd.f32 %v755, %v787
        %v820 = vadd.f32 %v756, %v788
        %v821 = vadd.f32 %v757, %v789
        %v822 = vadd.f32 %v758, %v790
        %v823 = vadd.f32 %v759, %v791
        %v824 = vadd.f32 %v760, %v792
        %v825 = vadd.f32 %v761, %v793
        %v826 = vmul.f32 %v636, 0.25
        %v827 = vmul.f32 %v714, 0.25
        %v828 = vmul.f32 %v639, 0.25
        %v829 = vmul.f32 %v715, 0.25
        %v830 = vmul.f32 %v642, 0.25
        %v831 = vmul.f32 %v716, 0.25
        %v832 = vmul.f32 %v645, 0.25
        %v833 = vmul.f32 %v717, 0.25
        %v834 = vmul.f32 %v648, 0.25
        %v835 = vmul.f32 %v718, 0.25
        %v836 = vmul.f32 %v651, 0.25
        %v837 = vmul.f32 %v719, 0.25
        %v838 = vmul.f32 %v654, 0.25
        %v839 = vmul.f32 %v720, 0.25
        %v840 = vmul.f32 %v657, 0.25
        %v841 = vmul.f32 %v721, 0.25
        %v842 = vmul.f32 %v660, 0.25
        %v843 = vmul.f32 %v722, 0.25
        %v844 = vmul.f32 %v663, 0.25
        %v845 = vmul.f32 %v723, 0.25
        %v846 = vmul.f32 %v666, 0.25
        %v847 = vmul.f32 %v724, 0.25
        %v848 = vmul.f32 %v669, 0.25
        %v849 = vmul.f32 %v725, 0.25
        %v850 = vmul.f32 %v672, 0.25
        %v851 = vmul.f32 %v726, 0.25
        %v852 = vmul.f32 %v675, 0.25
        %v853 = vmul.f32 %v727, 0.25
        %v854 = vmul.f32 %v678, 0.25
        %v855 = vmul.f32 %v728, 0.25
        %v856 = vmul.f32 %v681, 0.25
        %v857 = vmul.f32 %v729, 0.25
        %v858 = vadd.f32 %v730, %v826
        %v859 = vadd.f32 %v731, %v827
        %v860 = vadd.f32 %v732, %v828
        %v861 = vadd.f32 %v733, %v829
        %v862 = vadd.f32 %v734, %v830
        %v863 = vadd.f32 %v735, %v831
        %v864 = vadd.f32 %v736, %v832
        %v865 = vadd.f32 %v737, %v833
        %v866 = vadd.f32 %v738, %v834
        %v867 = vadd.f32 %v739, %v835
        %v868 = vadd.f32 %v740, %v836
        %v869 = vadd.f32 %v741, %v837
        %v870 = vadd.f32 %v742, %v838
        %v871 = vadd.f32 %v743, %v839
        %v872 = vadd.f32 %v744, %v840
        %v873 = vadd.f32 %v745, %v841
        %v874 = vadd.f32 %v746, %v842
        %v875 = vadd.f32 %v747, %v843
        %v876 = vadd.f32 %v748, %v844
        %v877 = vadd.f32 %v749, %v845
        %v878 = vadd.f32 %v750, %v846
        %v879 = vadd.f32 %v751, %v847
        %v880 = vadd.f32 %v752, %v848
        %v881 = vadd.f32 %v753, %v849
        %v882 = vadd.f32 %v754, %v850
        %v883 = vadd.f32 %v755, %v851
        %v884 = vadd.f32 %v756, %v852
        %v885 = vadd.f32 %v757, %v853
        %v886 = vadd.f32 %v758, %v854
        %v887 = vadd.f32 %v759, %v855
        %v888 = vadd.f32 %v760, %v856
        %v889 = vadd.f32 %v761, %v857
        %922 = vrot.lane.b32.xlu0 %v858, 32
        %v923 = vpop.permute.xlu0 %922
        %924 = vrot.lane.b32.xlu0 %v859, 32
        %v925 = vpop.permute.xlu0 %924
        %926 = vrot.lane.b32.xlu0 %v860, 32
        %v927 = vpop.permute.xlu0 %926
        %928 = vrot.lane.b32.xlu0 %v861, 32
        %v929 = vpop.permute.xlu0 %928
        %930 = vrot.lane.b32.xlu0 %v862, 32
        %v931 = vpop.permute.xlu0 %930
        %932 = vrot.lane.b32.xlu0 %v863, 32
        %v933 = vpop.permute.xlu0 %932
        %934 = vrot.lane.b32.xlu0 %v864, 32
        %v935 = vpop.permute.xlu0 %934
        %936 = vrot.lane.b32.xlu0 %v865, 32
        %v937 = vpop.permute.xlu0 %936
        %938 = vrot.lane.b32.xlu0 %v866, 32
        %v939 = vpop.permute.xlu0 %938
        %940 = vrot.lane.b32.xlu0 %v867, 32
        %v941 = vpop.permute.xlu0 %940
        %942 = vrot.lane.b32.xlu0 %v868, 32
        %v943 = vpop.permute.xlu0 %942
        %944 = vrot.lane.b32.xlu0 %v869, 32
        %v945 = vpop.permute.xlu0 %944
        %946 = vrot.lane.b32.xlu0 %v870, 32
        %v947 = vpop.permute.xlu0 %946
        %948 = vrot.lane.b32.xlu0 %v871, 32
        %v949 = vpop.permute.xlu0 %948
        %950 = vrot.lane.b32.xlu0 %v872, 32
        %v951 = vpop.permute.xlu0 %950
        %952 = vrot.lane.b32.xlu0 %v873, 32
        %v953 = vpop.permute.xlu0 %952
        %954 = vrot.lane.b32.xlu0 %v874, 32
        %v955 = vpop.permute.xlu0 %954
        %956 = vrot.lane.b32.xlu0 %v875, 32
        %v957 = vpop.permute.xlu0 %956
        %958 = vrot.lane.b32.xlu0 %v876, 32
        %v959 = vpop.permute.xlu0 %958
        %960 = vrot.lane.b32.xlu0 %v877, 32
        %v961 = vpop.permute.xlu0 %960
        %962 = vrot.lane.b32.xlu0 %v878, 32
        %v963 = vpop.permute.xlu0 %962
        %964 = vrot.lane.b32.xlu0 %v879, 32
        %v965 = vpop.permute.xlu0 %964
        %966 = vrot.lane.b32.xlu0 %v880, 32
        %v967 = vpop.permute.xlu0 %966
        %968 = vrot.lane.b32.xlu0 %v881, 32
        %v969 = vpop.permute.xlu0 %968
        %970 = vrot.lane.b32.xlu0 %v882, 32
        %v971 = vpop.permute.xlu0 %970
        %972 = vrot.lane.b32.xlu0 %v883, 32
        %v973 = vpop.permute.xlu0 %972
        %974 = vrot.lane.b32.xlu0 %v884, 32
        %v975 = vpop.permute.xlu0 %974
        %976 = vrot.lane.b32.xlu0 %v885, 32
        %v977 = vpop.permute.xlu0 %976
        %978 = vrot.lane.b32.xlu0 %v886, 32
        %v979 = vpop.permute.xlu0 %978
        %980 = vrot.lane.b32.xlu0 %v887, 32
        %v981 = vpop.permute.xlu0 %980
        %982 = vrot.lane.b32.xlu0 %v888, 32
        %v983 = vpop.permute.xlu0 %982
        %984 = vrot.lane.b32.xlu0 %v889, 32
        %v985 = vpop.permute.xlu0 %984
        %vm1018 = vcmask 261120
        %v1019 = vsel %vm1018, %v794, %v923
        %v1020 = vsel %vm1018, %v795, %v925
        %v1021 = vsel %vm1018, %v796, %v927
        %v1022 = vsel %vm1018, %v797, %v929
        %v1023 = vsel %vm1018, %v798, %v931
        %v1024 = vsel %vm1018, %v799, %v933
        %v1025 = vsel %vm1018, %v800, %v935
        %v1026 = vsel %vm1018, %v801, %v937
        %v1027 = vsel %vm1018, %v802, %v939
        %v1028 = vsel %vm1018, %v803, %v941
        %v1029 = vsel %vm1018, %v804, %v943
        %v1030 = vsel %vm1018, %v805, %v945
        %v1031 = vsel %vm1018, %v806, %v947
        %v1032 = vsel %vm1018, %v807, %v949
        %v1033 = vsel %vm1018, %v808, %v951
        %v1034 = vsel %vm1018, %v809, %v953
        %v1035 = vsel %vm1018, %v810, %v955
        %v1036 = vsel %vm1018, %v811, %v957
        %v1037 = vsel %vm1018, %v812, %v959
        %v1038 = vsel %vm1018, %v813, %v961
        %v1039 = vsel %vm1018, %v814, %v963
        %v1040 = vsel %vm1018, %v815, %v965
        %v1041 = vsel %vm1018, %v816, %v967
        %v1042 = vsel %vm1018, %v817, %v969
        %v1043 = vsel %vm1018, %v818, %v971
        %v1044 = vsel %vm1018, %v819, %v973
        %v1045 = vsel %vm1018, %v820, %v975
        %v1046 = vsel %vm1018, %v821, %v977
        %v1047 = vsel %vm1018, %v822, %v979
        %v1048 = vsel %vm1018, %v823, %v981
        %v1049 = vsel %vm1018, %v824, %v983
        %v1050 = vsel %vm1018, %v825, %v985
        %vm1051 = vcmask 523264
        %1052 = vst.msk [vmem:[%s139] sm:$0xff] %vm1051, %v1019
        %1053 = vst.msk [vmem:[%s139 + $0x8] sm:$0xff] %vm1051, %v1020
        %1054 = vst.msk [vmem:[%s139 + $0x10] sm:$0xff] %vm1051, %v1021
        %1055 = vst.msk [vmem:[%s139 + $0x18] sm:$0xff] %vm1051, %v1022
        %1056 = vst.msk [vmem:[%s139 + $0x20] sm:$0xff] %vm1051, %v1023
        %1057 = vst.msk [vmem:[%s139 + $0x28] sm:$0xff] %vm1051, %v1024
        %1058 = vst.msk [vmem:[%s139 + $0x30] sm:$0xff] %vm1051, %v1025
        %1059 = vst.msk [vmem:[%s139 + $0x38] sm:$0xff] %vm1051, %v1026
        %1060 = vst.msk [vmem:[%s139 + $0x40] sm:$0xff] %vm1051, %v1027
        %1061 = vst.msk [vmem:[%s139 + $0x48] sm:$0xff] %vm1051, %v1028
        %1062 = vst.msk [vmem:[%s139 + $0x50] sm:$0xff] %vm1051, %v1029
        %1063 = vst.msk [vmem:[%s139 + $0x58] sm:$0xff] %vm1051, %v1030
        %1064 = vst.msk [vmem:[%s139 + $0x60] sm:$0xff] %vm1051, %v1031
        %1065 = vst.msk [vmem:[%s139 + $0x68] sm:$0xff] %vm1051, %v1032
        %1066 = vst.msk [vmem:[%s139 + $0x70] sm:$0xff] %vm1051, %v1033
        %1067 = vst.msk [vmem:[%s139 + $0x78] sm:$0xff] %vm1051, %v1034
        %1068 = vst.msk [vmem:[%s139 + $0x80] sm:$0xff] %vm1051, %v1035
        %1069 = vst.msk [vmem:[%s139 + $0x88] sm:$0xff] %vm1051, %v1036
        %1070 = vst.msk [vmem:[%s139 + $0x90] sm:$0xff] %vm1051, %v1037
        %1071 = vst.msk [vmem:[%s139 + $0x98] sm:$0xff] %vm1051, %v1038
        %1072 = vst.msk [vmem:[%s139 + $0xa0] sm:$0xff] %vm1051, %v1039
        %1073 = vst.msk [vmem:[%s139 + $0xa8] sm:$0xff] %vm1051, %v1040
        %1074 = vst.msk [vmem:[%s139 + $0xb0] sm:$0xff] %vm1051, %v1041
        %1075 = vst.msk [vmem:[%s139 + $0xb8] sm:$0xff] %vm1051, %v1042
        %1076 = vst.msk [vmem:[%s139 + $0xc0] sm:$0xff] %vm1051, %v1043
        %1077 = vst.msk [vmem:[%s139 + $0xc8] sm:$0xff] %vm1051, %v1044
        %1078 = vst.msk [vmem:[%s139 + $0xd0] sm:$0xff] %vm1051, %v1045
        %1079 = vst.msk [vmem:[%s139 + $0xd8] sm:$0xff] %vm1051, %v1046
        %1080 = vst.msk [vmem:[%s139 + $0xe0] sm:$0xff] %vm1051, %v1047
        %1081 = vst.msk [vmem:[%s139 + $0xe8] sm:$0xff] %vm1051, %v1048
        %1082 = vst.msk [vmem:[%s139 + $0xf0] sm:$0xff] %vm1051, %v1049
        %1083 = vst.msk [vmem:[%s139 + $0xf8] sm:$0xff] %vm1051, %v1050
        %s1084 = sand.u32 %s71, 1
        %s1085 = scalar_lea.sflag [#allocation3], %s1084
        %s1086 = sand.u32 %s71, 1
        %s1087 = smul.addr %s1086, 256
        %s1088 = scalar_lea.vmem [#allocation2], %s1087
        // Predicated region
        $region29: #{tpu_custom_call.1} parent=27 // pred_check
          %p1089 = pneg %p81
        $region30: #{tpu_custom_call.1} parent=27 // pred_check_branch
          %1091 = sbr.rel (%p1089) target = $region32
        $region31: #{tpu_custom_call.1} parent=27 // pred_region
          %s1092 = smul.u32 16, %s16
          %s1094 = ssub.s32 4096, 4096
          %1095 = vsyncadd %s1085, %s1094
          %s1096 = smul.addr %s1092, 2
          %s1097 = smul.addr %s1096, 128
          %s1098 = scalar_lea.hbm %s2, %s1097
          %s1099 = sshll.u32 %s1088, 4
          %s1100 = int_to_ptr.vmem [resolvable:$true] %s1099
          %1105 = dma.vmem_to_hbm [thread:$0]  %s1100, 4096, %s1098, %s1085, 128, 128, 8
        $region32: #{tpu_custom_call.1} parent=27 // pred_fallthru
          _
      $region28: #{tpu_custom_call.1} parent=5 // pred_fallthru
        _
      %p1106 = scmp.le.s32.totalorder 2, %s11
      // Predicated region
      $region33: #{tpu_custom_call.1} parent=5 // pred_check
        %p1107 = pneg %p1106
      $region34: #{tpu_custom_call.1} parent=5 // pred_check_branch
        %1109 = sbr.rel (%p1107) target = $region36
      $region35: #{tpu_custom_call.1} parent=5 // pred_region
        %s1110 = ssub.s32 %s11, 2
        // Predicated region
        $region37: #{tpu_custom_call.1} parent=35 // pred_check
          %p1111 = pneg %p87
        $region38: #{tpu_custom_call.1} parent=35 // pred_check_branch
          %1113 = sbr.rel (%p1111) target = $region40
        $region39: #{tpu_custom_call.1} parent=35 // pred_region
          %s1114 = sand.u32 %s72, 1
          %s1115 = scalar_lea.sflag [#allocation3], %s1114
          %s1116 = sand.u32 %s72, 1
          %s1117 = smul.addr %s1116, 256
          %s1118 = scalar_lea.vmem [#allocation2], %s1117
          %1119 = dma.done %s1115, 4096
        $region40: #{tpu_custom_call.1} parent=35 // pred_fallthru
          _
      $region36: #{tpu_custom_call.1} parent=5 // pred_fallthru
        _
    $region6: #{tpu_custom_call.1} parent=1 // loop_footer
      %s15 = sadd.s32 1, %s11
    $region7: #{tpu_custom_call.1} parent=1 // loop_footer_branch
      %10 = sbr.rel target = $region3
    $region8: #{tpu_custom_call.1} parent=1 // loop_exit
      _
    %1120 = vsyncpa [#allocation3], 1
    %s1121 = scalar_lea.sflag [#allocation3], 1
    %1122 = vsyncpa %s1121, 1

</llo_original>
